<compile_context>
chip_gen: v7x
topology: tpu7x:2x2x1
jax: 0.10.0
libtpu: 0.0.40
codegen_flags: <defaults>
</compile_context>

<pallas_src>
import math

import jax
import jax.numpy as jnp
from jax import lax
from jax.experimental import pallas as pl
from jax.experimental.pallas import tpu as pltpu


def make_bilstm_kernel(T, B, H):
    """Kernel closure over the static problem sizes."""
    H2 = 2 * H  # fused (fwd|bwd) state width

    def kernel(xcat_ref, w_in_ref, b_in_ref, w_rec_ref,
               wemb_f_ref, wemb_b_ref, bemb_ref,
               out_ref,
               gx_ref, rec_f_ref, rec_b_ref):
        # ---- hoisted input projection (both directions, biases folded) ----
        # gx[t*B+b, :] = [i_f i_b f_f f_b g_f g_b o_f o_b] pre-activations from x
        gx_ref[...] = (jnp.dot(xcat_ref[...], w_in_ref[...],
                               preferred_element_type=jnp.float32)
                       + b_in_ref[...])

        # hoist the invariant recurrent weight read out of the loop
        w_rec = w_rec_ref[...]                      # (2H, 8H) block-diagonal

        def step(s, carry):
            h_all, c_all = carry                    # (B, 2H) each, in vregs
            gates = (gx_ref[pl.ds(s * B, B), :]
                     + jnp.dot(h_all, w_rec,
                               preferred_element_type=jnp.float32))  # (B, 8H)
            i = jax.nn.sigmoid(gates[:, 0 * H2:1 * H2])
            f = jax.nn.sigmoid(gates[:, 1 * H2:2 * H2])
            g = jnp.tanh(gates[:, 2 * H2:3 * H2])
            o = jax.nn.sigmoid(gates[:, 3 * H2:4 * H2])
            c_new = f * c_all + i * g               # fused fwd|bwd cell update
            h_new = o * jnp.tanh(c_new)
            # forward hidden belongs to time s; backward hidden to time T-1-s
            rec_f_ref[pl.ds(s * B, B), :] = h_new[:, :H]
            rec_b_ref[pl.ds((T - 1 - s) * B, B), :] = h_new[:, H:]
            return h_new, c_new

        h0 = jnp.zeros((B, H2), jnp.float32)
        c0 = jnp.zeros((B, H2), jnp.float32)
        lax.fori_loop(0, T, step, (h0, c0), unroll=True)

        # ---- embedding: Linear(2H -> nOut), split weights avoid a lane concat ----
        out_ref[...] = (jnp.dot(rec_f_ref[...], wemb_f_ref[...],
                                preferred_element_type=jnp.float32)
                        + jnp.dot(rec_b_ref[...], wemb_b_ref[...],
                                  preferred_element_type=jnp.float32)
                        + bemb_ref[...])

    return kernel


def bidirectional_lstm_forward(x, params):
    T, B, nIn = x.shape
    H = params["w_hh_f"].shape[1]
    nOut = params["w_emb"].shape[0]
    H2 = 2 * H
    nOutP = ((nOut + 127) // 128) * 128             # lane-dense output width

    f32 = jnp.float32

    # ---- input side: concat x with its time-reversal so the backward gates are
    # already time-aligned with the loop index (row s holds x(s) | x(T-1-s)) ----
    x2d = x.reshape(T * B, nIn)
    xrev2d = x[::-1].reshape(T * B, nIn)
    x_cat = jnp.concatenate([x2d, xrev2d], axis=-1).astype(f32)   # (T*B, 2*nIn)

    # Fused gate-column layout: [i_f i_b | f_f f_b | g_f g_b | o_f o_b], each H wide.
    z_in = jnp.zeros((nIn, H), f32)
    z_h = jnp.zeros((H, H), f32)
    w_in_cols, w_rec_cols, b_cols = [], [], []
    b_f = (params["b_ih_f"] + params["b_hh_f"]).astype(f32)
    b_b = (params["b_ih_b"] + params["b_hh_b"]).astype(f32)
    for k in range(4):                               # PyTorch gate order i, f, g, o
        sl = slice(k * H, (k + 1) * H)
        wif = params["w_ih_f"][sl, :].astype(f32).T  # (nIn, H)
        wib = params["w_ih_b"][sl, :].astype(f32).T
        whf = params["w_hh_f"][sl, :].astype(f32).T  # (H, H)
        whb = params["w_hh_b"][sl, :].astype(f32).T
        # x rows feed only forward columns; x_rev rows feed only backward columns
        w_in_cols += [jnp.concatenate([wif, z_in], 0),
                      jnp.concatenate([z_in, wib], 0)]
        # h_f rows feed only forward columns; h_b rows only backward columns
        w_rec_cols += [jnp.concatenate([whf, z_h], 0),
                       jnp.concatenate([z_h, whb], 0)]
        b_cols += [b_f[sl], b_b[sl]]
    w_in = jnp.concatenate(w_in_cols, axis=1)        # (2*nIn, 8H)
    w_rec = jnp.concatenate(w_rec_cols, axis=1)      # (2H, 8H) block-diagonal
    b_in = jnp.concatenate(b_cols)[None, :]          # (1, 8H)

    # ---- embedding weights, split per direction and padded lane-dense ----
    pad = nOutP - nOut
    wemb_f = jnp.pad(params["w_emb"][:, :H].astype(f32).T, ((0, 0), (0, pad)))
    wemb_b = jnp.pad(params["w_emb"][:, H:].astype(f32).T, ((0, 0), (0, pad)))
    bemb = jnp.pad(params["b_emb"].astype(f32), (0, pad))[None, :]   # (1, nOutP)

    flops = (2 * T * B * (2 * nIn) * (8 * H)         # input projection
             + 2 * T * B * H2 * (8 * H)              # recurrence
             + 2 * 2 * T * B * H * nOutP)            # embedding (2 matmuls)
    transcendentals = 5 * T * B * H2                 # 3 sigmoid + 2 tanh per unit
    bytes_accessed = 4 * (x_cat.size + w_in.size + b_in.size + w_rec.size
                          + wemb_f.size + wemb_b.size + bemb.size
                          + T * B * nOutP)

    vmem = pl.BlockSpec(memory_space=pltpu.MemorySpace.VMEM)
    out2d = pl.pallas_call(
        make_bilstm_kernel(T, B, H),
        out_shape=jax.ShapeDtypeStruct((T * B, nOutP), jnp.float32),
        in_specs=[vmem] * 7,
        out_specs=vmem,
        scratch_shapes=[
            pltpu.VMEM((T * B, 8 * H), jnp.float32),   # gx: precomputed input gates
            pltpu.VMEM((T * B, H), jnp.float32),       # rec_f (2-D, matmul-ready)
            pltpu.VMEM((T * B, H), jnp.float32),       # rec_b (2-D, matmul-ready)
        ],
        compiler_params=pltpu.CompilerParams(vmem_limit_bytes=32 * 1024 * 1024),
        cost_estimate=pl.CostEstimate(flops=flops,
                                      transcendentals=transcendentals,
                                      bytes_accessed=bytes_accessed),
    )(x_cat, w_in, b_in, w_rec, wemb_f, wemb_b, bemb)

    return out2d[:, :nOut].reshape(T, B, nOut)


def init_params(key, nIn, nHidden, nOut):
    """Deterministic init mimicking PyTorch defaults (uniform(-1/sqrt(fan), +))."""
    H = nHidden
    ks = jax.random.split(key, 10)
    kl = 1.0 / math.sqrt(H)
    ke = 1.0 / math.sqrt(2 * H)
    u = lambda k_, shape, s: jax.random.uniform(k_, shape, jnp.float32, -s, s)
    return {
        "w_ih_f": u(ks[0], (4 * H, nIn), kl),
        "w_hh_f": u(ks[1], (4 * H, H), kl),
        "b_ih_f": u(ks[2], (4 * H,), kl),
        "b_hh_f": u(ks[3], (4 * H,), kl),
        "w_ih_b": u(ks[4], (4 * H, nIn), kl),
        "w_hh_b": u(ks[5], (4 * H, H), kl),
        "b_ih_b": u(ks[6], (4 * H,), kl),
        "b_hh_b": u(ks[7], (4 * H,), kl),
        "w_emb": u(ks[8], (nOut, 2 * H), ke),
        "b_emb": u(ks[9], (nOut,), ke),
    }


def reference_forward(x, params):
    """Pure-JAX reference replicating PyTorch BidirectionalLSTM.forward."""
    def run_dir(x, w_ih, w_hh, b_ih, b_hh, reverse):
        T, B, _ = x.shape
        H = w_hh.shape[1]
        xs = x[::-1] if reverse else x

        def step(carry, x_t):
            h, c = carry
            gates = x_t @ w_ih.T + b_ih + h @ w_hh.T + b_hh
            i, f, g, o = jnp.split(gates, 4, axis=-1)
            i = jax.nn.sigmoid(i)
            f = jax.nn.sigmoid(f)
            g = jnp.tanh(g)
            o = jax.nn.sigmoid(o)
            c = f * c + i * g
            h = o * jnp.tanh(c)
            return (h, c), h

        init = (jnp.zeros((B, H), jnp.float32), jnp.zeros((B, H), jnp.float32))
        _, hs = lax.scan(step, init, xs)
        return hs[::-1] if reverse else hs

    hf = run_dir(x, params["w_ih_f"], params["w_hh_f"],
                 params["b_ih_f"], params["b_hh_f"], reverse=False)
    hb = run_dir(x, params["w_ih_b"], params["w_hh_b"],
                 params["b_ih_b"], params["b_hh_b"], reverse=True)
    rec = jnp.concatenate([hf, hb], axis=-1)           # (T, B, 2H)
    T, B, h2 = rec.shape
    out = rec.reshape(T * B, h2) @ params["w_emb"].T + params["b_emb"]
    return out.reshape(T, B, -1)


if __name__ == "__main__":
    T, B, nIn, nHidden, nOut = 8, 2, 16, 32, 10
    key = jax.random.PRNGKey(0)
    kx, kp = jax.random.split(key)
    x = jax.random.normal(kx, (T, B, nIn), dtype=jnp.float32)
    params = init_params(kp, nIn, nHidden, nOut)

    out = bidirectional_lstm_forward(x, params)
    out = jax.block_until_ready(out)

    ref = reference_forward(x, params)
    assert out.shape == (T, B, nOut), out.shape
    assert jnp.allclose(out, ref, rtol=1e-2, atol=1e-2), (
        f"max abs err {jnp.max(jnp.abs(out - ref))}")
    print("KERNEL_OK")
</pallas_src>

<mosaic_0001>
module attributes {stable_mosaic.version = 11 : i64} {
  func.func @kernel(%arg0: memref<16x32xf32, #tpu.memory_space<vmem>>, %arg1: memref<32x256xf32, #tpu.memory_space<vmem>>, %arg2: memref<1x256xf32, #tpu.memory_space<vmem>>, %arg3: memref<64x256xf32, #tpu.memory_space<vmem>>, %arg4: memref<32x128xf32, #tpu.memory_space<vmem>>, %arg5: memref<32x128xf32, #tpu.memory_space<vmem>>, %arg6: memref<1x128xf32, #tpu.memory_space<vmem>>, %arg7: memref<16x128xf32, #tpu.memory_space<vmem>>, %arg8: memref<16x256xf32, #tpu.memory_space<vmem>>, %arg9: memref<16x32xf32, #tpu.memory_space<vmem>>, %arg10: memref<16x32xf32, #tpu.memory_space<vmem>>) attributes {dimension_semantics = [], scalar_prefetch = 0 : i64, scratch_operands = 3 : i64, tpu.core_type = #tpu.core_type<tc>} {
    %c0 = arith.constant 0 : index
    %c0_0 = arith.constant 0 : index
    %0 = vector.load %arg0[%c0, %c0_0] : memref<16x32xf32, #tpu.memory_space<vmem>>, vector<16x32xf32>
    %c0_1 = arith.constant 0 : index
    %c0_2 = arith.constant 0 : index
    %1 = vector.load %arg1[%c0_1, %c0_2] : memref<32x256xf32, #tpu.memory_space<vmem>>, vector<32x256xf32>
    %cst = arith.constant dense<0.000000e+00> : vector<16x256xf32>
    %2 = tpu.matmul %0, %1, %cst {dimension_numbers = #tpu.dot_dimension_numbers<[1], [0], [0], [1], [0, 0, 1, 1], [], []>} : vector<16x32xf32>, vector<32x256xf32>, vector<16x256xf32> -> vector<16x256xf32>
    %c0_3 = arith.constant 0 : index
    %c0_4 = arith.constant 0 : index
    %3 = vector.load %arg2[%c0_3, %c0_4] : memref<1x256xf32, #tpu.memory_space<vmem>>, vector<1x256xf32>
    %4 = vector.broadcast %3 : vector<1x256xf32> to vector<16x256xf32>
    %5 = arith.addf %2, %4 : vector<16x256xf32>
    %c0_5 = arith.constant 0 : index
    %c0_6 = arith.constant 0 : index
    %6 = vector.load %arg8[%c0_5, %c0_6] : memref<16x256xf32, #tpu.memory_space<vmem>>, vector<16x256xf32>
    tpu.vector_store %arg8[%c0_5, %c0_6], %5 {strides = array<i32>} : memref<16x256xf32, #tpu.memory_space<vmem>>, vector<16x256xf32>,
    %c0_7 = arith.constant 0 : index
    %c0_8 = arith.constant 0 : index
    %7 = vector.load %arg3[%c0_7, %c0_8] : memref<64x256xf32, #tpu.memory_space<vmem>>, vector<64x256xf32>
    %cst_9 = arith.constant 0.000000e+00 : f32
    %8 = vector.broadcast %cst_9 : f32 to vector<2x64xf32>
    %cst_10 = arith.constant 0.000000e+00 : f32
    %9 = vector.broadcast %cst_10 : f32 to vector<2x64xf32>
    %c0_i32 = arith.constant 0 : i32
    %c2_i32 = arith.constant 2 : i32
    %10 = arith.muli %c0_i32, %c2_i32 : i32
    %11 = arith.index_cast %10 : i32 to index
    %c0_11 = arith.constant 0 : index
    %12 = vector.load %arg8[%11, %c0_11] : memref<16x256xf32, #tpu.memory_space<vmem>>, vector<2x256xf32>
    %cst_12 = arith.constant dense<0.000000e+00> : vector<2x256xf32>
    %13 = tpu.matmul %8, %7, %cst_12 {dimension_numbers = #tpu.dot_dimension_numbers<[1], [0], [0], [1], [0, 0, 1, 1], [], []>} : vector<2x64xf32>, vector<64x256xf32>, vector<2x256xf32> -> vector<2x256xf32>
    %14 = arith.addf %12, %13 : vector<2x256xf32>
    %15 = vector.extract_strided_slice %14 {offsets = [0, 0], sizes = [2, 64], strides = [1, 1]} : vector<2x256xf32> to vector<2x64xf32>
    %16 = arith.negf %15 : vector<2x64xf32>
    %17 = math.exp %16 : vector<2x64xf32>
    %cst_13 = arith.constant 1.000000e+00 : f32
    %18 = vector.broadcast %cst_13 : f32 to vector<2x64xf32>
    %19 = arith.addf %18, %17 : vector<2x64xf32>
    %20 = arith.divf %18, %19 : vector<2x64xf32>
    %21 = vector.extract_strided_slice %14 {offsets = [0, 64], sizes = [2, 64], strides = [1, 1]} : vector<2x256xf32> to vector<2x64xf32>
    %22 = arith.negf %21 : vector<2x64xf32>
    %23 = math.exp %22 : vector<2x64xf32>
    %cst_14 = arith.constant 1.000000e+00 : f32
    %24 = vector.broadcast %cst_14 : f32 to vector<2x64xf32>
    %25 = arith.addf %24, %23 : vector<2x64xf32>
    %26 = arith.divf %24, %25 : vector<2x64xf32>
    %27 = vector.extract_strided_slice %14 {offsets = [0, 128], sizes = [2, 64], strides = [1, 1]} : vector<2x256xf32> to vector<2x64xf32>
    %28 = math.tanh %27 : vector<2x64xf32>
    %29 = vector.extract_strided_slice %14 {offsets = [0, 192], sizes = [2, 64], strides = [1, 1]} : vector<2x256xf32> to vector<2x64xf32>
    %30 = arith.negf %29 : vector<2x64xf32>
    %31 = math.exp %30 : vector<2x64xf32>
    %cst_15 = arith.constant 1.000000e+00 : f32
    %32 = vector.broadcast %cst_15 : f32 to vector<2x64xf32>
    %33 = arith.addf %32, %31 : vector<2x64xf32>
    %34 = arith.divf %32, %33 : vector<2x64xf32>
    %35 = arith.mulf %26, %9 : vector<2x64xf32>
    %36 = arith.mulf %20, %28 : vector<2x64xf32>
    %37 = arith.addf %35, %36 : vector<2x64xf32>
    %38 = math.tanh %37 : vector<2x64xf32>
    %39 = arith.mulf %34, %38 : vector<2x64xf32>
    %40 = vector.extract_strided_slice %39 {offsets = [0, 0], sizes = [2, 32], strides = [1, 1]} : vector<2x64xf32> to vector<2x32xf32>
    %c2_i32_16 = arith.constant 2 : i32
    %41 = arith.muli %c0_i32, %c2_i32_16 : i32
    %42 = arith.index_cast %41 : i32 to index
    %c0_17 = arith.constant 0 : index
    %43 = vector.load %arg9[%42, %c0_17] : memref<16x32xf32, #tpu.memory_space<vmem>>, vector<2x32xf32>
    tpu.vector_store %arg9[%42, %c0_17], %40 {strides = array<i32>} : memref<16x32xf32, #tpu.memory_space<vmem>>, vector<2x32xf32>,
    %44 = vector.extract_strided_slice %39 {offsets = [0, 32], sizes = [2, 32], strides = [1, 1]} : vector<2x64xf32> to vector<2x32xf32>
    %c7_i32 = arith.constant 7 : i32
    %45 = arith.subi %c7_i32, %c0_i32 : i32
    %c2_i32_18 = arith.constant 2 : i32
    %46 = arith.muli %45, %c2_i32_18 : i32
    %47 = arith.index_cast %46 : i32 to index
    %c0_19 = arith.constant 0 : index
    %48 = vector.load %arg10[%47, %c0_19] : memref<16x32xf32, #tpu.memory_space<vmem>>, vector<2x32xf32>
    tpu.vector_store %arg10[%47, %c0_19], %44 {strides = array<i32>} : memref<16x32xf32, #tpu.memory_space<vmem>>, vector<2x32xf32>,
    %c1_i32 = arith.constant 1 : i32
    %c2_i32_20 = arith.constant 2 : i32
    %49 = arith.muli %c1_i32, %c2_i32_20 : i32
    %50 = arith.index_cast %49 : i32 to index
    %c0_21 = arith.constant 0 : index
    %51 = vector.load %arg8[%50, %c0_21] : memref<16x256xf32, #tpu.memory_space<vmem>>, vector<2x256xf32>
    %cst_22 = arith.constant dense<0.000000e+00> : vector<2x256xf32>
    %52 = tpu.matmul %39, %7, %cst_22 {dimension_numbers = #tpu.dot_dimension_numbers<[1], [0], [0], [1], [0, 0, 1, 1], [], []>} : vector<2x64xf32>, vector<64x256xf32>, vector<2x256xf32> -> vector<2x256xf32>
    %53 = arith.addf %51, %52 : vector<2x256xf32>
    %54 = vector.extract_strided_slice %53 {offsets = [0, 0], sizes = [2, 64], strides = [1, 1]} : vector<2x256xf32> to vector<2x64xf32>
    %55 = arith.negf %54 : vector<2x64xf32>
    %56 = math.exp %55 : vector<2x64xf32>
    %cst_23 = arith.constant 1.000000e+00 : f32
    %57 = vector.broadcast %cst_23 : f32 to vector<2x64xf32>
    %58 = arith.addf %57, %56 : vector<2x64xf32>
    %59 = arith.divf %57, %58 : vector<2x64xf32>
    %60 = vector.extract_strided_slice %53 {offsets = [0, 64], sizes = [2, 64], strides = [1, 1]} : vector<2x256xf32> to vector<2x64xf32>
    %61 = arith.negf %60 : vector<2x64xf32>
    %62 = math.exp %61 : vector<2x64xf32>
    %cst_24 = arith.constant 1.000000e+00 : f32
    %63 = vector.broadcast %cst_24 : f32 to vector<2x64xf32>
    %64 = arith.addf %63, %62 : vector<2x64xf32>
    %65 = arith.divf %63, %64 : vector<2x64xf32>
    %66 = vector.extract_strided_slice %53 {offsets = [0, 128], sizes = [2, 64], strides = [1, 1]} : vector<2x256xf32> to vector<2x64xf32>
    %67 = math.tanh %66 : vector<2x64xf32>
    %68 = vector.extract_strided_slice %53 {offsets = [0, 192], sizes = [2, 64], strides = [1, 1]} : vector<2x256xf32> to vector<2x64xf32>
    %69 = arith.negf %68 : vector<2x64xf32>
    %70 = math.exp %69 : vector<2x64xf32>
    %cst_25 = arith.constant 1.000000e+00 : f32
    %71 = vector.broadcast %cst_25 : f32 to vector<2x64xf32>
    %72 = arith.addf %71, %70 : vector<2x64xf32>
    %73 = arith.divf %71, %72 : vector<2x64xf32>
    %74 = arith.mulf %65, %37 : vector<2x64xf32>
    %75 = arith.mulf %59, %67 : vector<2x64xf32>
    %76 = arith.addf %74, %75 : vector<2x64xf32>
    %77 = math.tanh %76 : vector<2x64xf32>
    %78 = arith.mulf %73, %77 : vector<2x64xf32>
    %79 = vector.extract_strided_slice %78 {offsets = [0, 0], sizes = [2, 32], strides = [1, 1]} : vector<2x64xf32> to vector<2x32xf32>
    %c2_i32_26 = arith.constant 2 : i32
    %80 = arith.muli %c1_i32, %c2_i32_26 : i32
    %81 = arith.index_cast %80 : i32 to index
    %c0_27 = arith.constant 0 : index
    %82 = vector.load %arg9[%81, %c0_27] : memref<16x32xf32, #tpu.memory_space<vmem>>, vector<2x32xf32>
    tpu.vector_store %arg9[%81, %c0_27], %79 {strides = array<i32>} : memref<16x32xf32, #tpu.memory_space<vmem>>, vector<2x32xf32>,
    %83 = vector.extract_strided_slice %78 {offsets = [0, 32], sizes = [2, 32], strides = [1, 1]} : vector<2x64xf32> to vector<2x32xf32>
    %c7_i32_28 = arith.constant 7 : i32
    %84 = arith.subi %c7_i32_28, %c1_i32 : i32
    %c2_i32_29 = arith.constant 2 : i32
    %85 = arith.muli %84, %c2_i32_29 : i32
    %86 = arith.index_cast %85 : i32 to index
    %c0_30 = arith.constant 0 : index
    %87 = vector.load %arg10[%86, %c0_30] : memref<16x32xf32, #tpu.memory_space<vmem>>, vector<2x32xf32>
    tpu.vector_store %arg10[%86, %c0_30], %83 {strides = array<i32>} : memref<16x32xf32, #tpu.memory_space<vmem>>, vector<2x32xf32>,
    %c2_i32_31 = arith.constant 2 : i32
    %c2_i32_32 = arith.constant 2 : i32
    %88 = arith.muli %c2_i32_31, %c2_i32_32 : i32
    %89 = arith.index_cast %88 : i32 to index
    %c0_33 = arith.constant 0 : index
    %90 = vector.load %arg8[%89, %c0_33] : memref<16x256xf32, #tpu.memory_space<vmem>>, vector<2x256xf32>
    %cst_34 = arith.constant dense<0.000000e+00> : vector<2x256xf32>
    %91 = tpu.matmul %78, %7, %cst_34 {dimension_numbers = #tpu.dot_dimension_numbers<[1], [0], [0], [1], [0, 0, 1, 1], [], []>} : vector<2x64xf32>, vector<64x256xf32>, vector<2x256xf32> -> vector<2x256xf32>
    %92 = arith.addf %90, %91 : vector<2x256xf32>
    %93 = vector.extract_strided_slice %92 {offsets = [0, 0], sizes = [2, 64], strides = [1, 1]} : vector<2x256xf32> to vector<2x64xf32>
    %94 = arith.negf %93 : vector<2x64xf32>
    %95 = math.exp %94 : vector<2x64xf32>
    %cst_35 = arith.constant 1.000000e+00 : f32
    %96 = vector.broadcast %cst_35 : f32 to vector<2x64xf32>
    %97 = arith.addf %96, %95 : vector<2x64xf32>
    %98 = arith.divf %96, %97 : vector<2x64xf32>
    %99 = vector.extract_strided_slice %92 {offsets = [0, 64], sizes = [2, 64], strides = [1, 1]} : vector<2x256xf32> to vector<2x64xf32>
    %100 = arith.negf %99 : vector<2x64xf32>
    %101 = math.exp %100 : vector<2x64xf32>
    %cst_36 = arith.constant 1.000000e+00 : f32
    %102 = vector.broadcast %cst_36 : f32 to vector<2x64xf32>
    %103 = arith.addf %102, %101 : vector<2x64xf32>
    %104 = arith.divf %102, %103 : vector<2x64xf32>
    %105 = vector.extract_strided_slice %92 {offsets = [0, 128], sizes = [2, 64], strides = [1, 1]} : vector<2x256xf32> to vector<2x64xf32>
    %106 = math.tanh %105 : vector<2x64xf32>
    %107 = vector.extract_strided_slice %92 {offsets = [0, 192], sizes = [2, 64], strides = [1, 1]} : vector<2x256xf32> to vector<2x64xf32>
    %108 = arith.negf %107 : vector<2x64xf32>
    %109 = math.exp %108 : vector<2x64xf32>
    %cst_37 = arith.constant 1.000000e+00 : f32
    %110 = vector.broadcast %cst_37 : f32 to vector<2x64xf32>
    %111 = arith.addf %110, %109 : vector<2x64xf32>
    %112 = arith.divf %110, %111 : vector<2x64xf32>
    %113 = arith.mulf %104, %76 : vector<2x64xf32>
    %114 = arith.mulf %98, %106 : vector<2x64xf32>
    %115 = arith.addf %113, %114 : vector<2x64xf32>
    %116 = math.tanh %115 : vector<2x64xf32>
    %117 = arith.mulf %112, %116 : vector<2x64xf32>
    %118 = vector.extract_strided_slice %117 {offsets = [0, 0], sizes = [2, 32], strides = [1, 1]} : vector<2x64xf32> to vector<2x32xf32>
    %c2_i32_38 = arith.constant 2 : i32
    %119 = arith.muli %c2_i32_31, %c2_i32_38 : i32
    %120 = arith.index_cast %119 : i32 to index
    %c0_39 = arith.constant 0 : index
    %121 = vector.load %arg9[%120, %c0_39] : memref<16x32xf32, #tpu.memory_space<vmem>>, vector<2x32xf32>
    tpu.vector_store %arg9[%120, %c0_39], %118 {strides = array<i32>} : memref<16x32xf32, #tpu.memory_space<vmem>>, vector<2x32xf32>,
    %122 = vector.extract_strided_slice %117 {offsets = [0, 32], sizes = [2, 32], strides = [1, 1]} : vector<2x64xf32> to vector<2x32xf32>
    %c7_i32_40 = arith.constant 7 : i32
    %123 = arith.subi %c7_i32_40, %c2_i32_31 : i32
    %c2_i32_41 = arith.constant 2 : i32
    %124 = arith.muli %123, %c2_i32_41 : i32
    %125 = arith.index_cast %124 : i32 to index
    %c0_42 = arith.constant 0 : index
    %126 = vector.load %arg10[%125, %c0_42] : memref<16x32xf32, #tpu.memory_space<vmem>>, vector<2x32xf32>
    tpu.vector_store %arg10[%125, %c0_42], %122 {strides = array<i32>} : memref<16x32xf32, #tpu.memory_space<vmem>>, vector<2x32xf32>,
    %c3_i32 = arith.constant 3 : i32
    %c2_i32_43 = arith.constant 2 : i32
    %127 = arith.muli %c3_i32, %c2_i32_43 : i32
    %128 = arith.index_cast %127 : i32 to index
    %c0_44 = arith.constant 0 : index
    %129 = vector.load %arg8[%128, %c0_44] : memref<16x256xf32, #tpu.memory_space<vmem>>, vector<2x256xf32>
    %cst_45 = arith.constant dense<0.000000e+00> : vector<2x256xf32>
    %130 = tpu.matmul %117, %7, %cst_45 {dimension_numbers = #tpu.dot_dimension_numbers<[1], [0], [0], [1], [0, 0, 1, 1], [], []>} : vector<2x64xf32>, vector<64x256xf32>, vector<2x256xf32> -> vector<2x256xf32>
    %131 = arith.addf %129, %130 : vector<2x256xf32>
    %132 = vector.extract_strided_slice %131 {offsets = [0, 0], sizes = [2, 64], strides = [1, 1]} : vector<2x256xf32> to vector<2x64xf32>
    %133 = arith.negf %132 : vector<2x64xf32>
    %134 = math.exp %133 : vector<2x64xf32>
    %cst_46 = arith.constant 1.000000e+00 : f32
    %135 = vector.broadcast %cst_46 : f32 to vector<2x64xf32>
    %136 = arith.addf %135, %134 : vector<2x64xf32>
    %137 = arith.divf %135, %136 : vector<2x64xf32>
    %138 = vector.extract_strided_slice %131 {offsets = [0, 64], sizes = [2, 64], strides = [1, 1]} : vector<2x256xf32> to vector<2x64xf32>
    %139 = arith.negf %138 : vector<2x64xf32>
    %140 = math.exp %139 : vector<2x64xf32>
    %cst_47 = arith.constant 1.000000e+00 : f32
    %141 = vector.broadcast %cst_47 : f32 to vector<2x64xf32>
    %142 = arith.addf %141, %140 : vector<2x64xf32>
    %143 = arith.divf %141, %142 : vector<2x64xf32>
    %144 = vector.extract_strided_slice %131 {offsets = [0, 128], sizes = [2, 64], strides = [1, 1]} : vector<2x256xf32> to vector<2x64xf32>
    %145 = math.tanh %144 : vector<2x64xf32>
    %146 = vector.extract_strided_slice %131 {offsets = [0, 192], sizes = [2, 64], strides = [1, 1]} : vector<2x256xf32> to vector<2x64xf32>
    %147 = arith.negf %146 : vector<2x64xf32>
    %148 = math.exp %147 : vector<2x64xf32>
    %cst_48 = arith.constant 1.000000e+00 : f32
    %149 = vector.broadcast %cst_48 : f32 to vector<2x64xf32>
    %150 = arith.addf %149, %148 : vector<2x64xf32>
    %151 = arith.divf %149, %150 : vector<2x64xf32>
    %152 = arith.mulf %143, %115 : vector<2x64xf32>
    %153 = arith.mulf %137, %145 : vector<2x64xf32>
    %154 = arith.addf %152, %153 : vector<2x64xf32>
    %155 = math.tanh %154 : vector<2x64xf32>
    %156 = arith.mulf %151, %155 : vector<2x64xf32>
    %157 = vector.extract_strided_slice %156 {offsets = [0, 0], sizes = [2, 32], strides = [1, 1]} : vector<2x64xf32> to vector<2x32xf32>
    %c2_i32_49 = arith.constant 2 : i32
    %158 = arith.muli %c3_i32, %c2_i32_49 : i32
    %159 = arith.index_cast %158 : i32 to index
    %c0_50 = arith.constant 0 : index
    %160 = vector.load %arg9[%159, %c0_50] : memref<16x32xf32, #tpu.memory_space<vmem>>, vector<2x32xf32>
    tpu.vector_store %arg9[%159, %c0_50], %157 {strides = array<i32>} : memref<16x32xf32, #tpu.memory_space<vmem>>, vector<2x32xf32>,
    %161 = vector.extract_strided_slice %156 {offsets = [0, 32], sizes = [2, 32], strides = [1, 1]} : vector<2x64xf32> to vector<2x32xf32>
    %c7_i32_51 = arith.constant 7 : i32
    %162 = arith.subi %c7_i32_51, %c3_i32 : i32
    %c2_i32_52 = arith.constant 2 : i32
    %163 = arith.muli %162, %c2_i32_52 : i32
    %164 = arith.index_cast %163 : i32 to index
    %c0_53 = arith.constant 0 : index
    %165 = vector.load %arg10[%164, %c0_53] : memref<16x32xf32, #tpu.memory_space<vmem>>, vector<2x32xf32>
    tpu.vector_store %arg10[%164, %c0_53], %161 {strides = array<i32>} : memref<16x32xf32, #tpu.memory_space<vmem>>, vector<2x32xf32>,
    %c4_i32 = arith.constant 4 : i32
    %c2_i32_54 = arith.constant 2 : i32
    %166 = arith.muli %c4_i32, %c2_i32_54 : i32
    %167 = arith.index_cast %166 : i32 to index
    %c0_55 = arith.constant 0 : index
    %168 = vector.load %arg8[%167, %c0_55] : memref<16x256xf32, #tpu.memory_space<vmem>>, vector<2x256xf32>
    %cst_56 = arith.constant dense<0.000000e+00> : vector<2x256xf32>
    %169 = tpu.matmul %156, %7, %cst_56 {dimension_numbers = #tpu.dot_dimension_numbers<[1], [0], [0], [1], [0, 0, 1, 1], [], []>} : vector<2x64xf32>, vector<64x256xf32>, vector<2x256xf32> -> vector<2x256xf32>
    %170 = arith.addf %168, %169 : vector<2x256xf32>
    %171 = vector.extract_strided_slice %170 {offsets = [0, 0], sizes = [2, 64], strides = [1, 1]} : vector<2x256xf32> to vector<2x64xf32>
    %172 = arith.negf %171 : vector<2x64xf32>
    %173 = math.exp %172 : vector<2x64xf32>
    %cst_57 = arith.constant 1.000000e+00 : f32
    %174 = vector.broadcast %cst_57 : f32 to vector<2x64xf32>
    %175 = arith.addf %174, %173 : vector<2x64xf32>
    %176 = arith.divf %174, %175 : vector<2x64xf32>
    %177 = vector.extract_strided_slice %170 {offsets = [0, 64], sizes = [2, 64], strides = [1, 1]} : vector<2x256xf32> to vector<2x64xf32>
    %178 = arith.negf %177 : vector<2x64xf32>
    %179 = math.exp %178 : vector<2x64xf32>
    %cst_58 = arith.constant 1.000000e+00 : f32
    %180 = vector.broadcast %cst_58 : f32 to vector<2x64xf32>
    %181 = arith.addf %180, %179 : vector<2x64xf32>
    %182 = arith.divf %180, %181 : vector<2x64xf32>
    %183 = vector.extract_strided_slice %170 {offsets = [0, 128], sizes = [2, 64], strides = [1, 1]} : vector<2x256xf32> to vector<2x64xf32>
    %184 = math.tanh %183 : vector<2x64xf32>
    %185 = vector.extract_strided_slice %170 {offsets = [0, 192], sizes = [2, 64], strides = [1, 1]} : vector<2x256xf32> to vector<2x64xf32>
    %186 = arith.negf %185 : vector<2x64xf32>
    %187 = math.exp %186 : vector<2x64xf32>
    %cst_59 = arith.constant 1.000000e+00 : f32
    %188 = vector.broadcast %cst_59 : f32 to vector<2x64xf32>
    %189 = arith.addf %188, %187 : vector<2x64xf32>
    %190 = arith.divf %188, %189 : vector<2x64xf32>
    %191 = arith.mulf %182, %154 : vector<2x64xf32>
    %192 = arith.mulf %176, %184 : vector<2x64xf32>
    %193 = arith.addf %191, %192 : vector<2x64xf32>
    %194 = math.tanh %193 : vector<2x64xf32>
    %195 = arith.mulf %190, %194 : vector<2x64xf32>
    %196 = vector.extract_strided_slice %195 {offsets = [0, 0], sizes = [2, 32], strides = [1, 1]} : vector<2x64xf32> to vector<2x32xf32>
    %c2_i32_60 = arith.constant 2 : i32
    %197 = arith.muli %c4_i32, %c2_i32_60 : i32
    %198 = arith.index_cast %197 : i32 to index
    %c0_61 = arith.constant 0 : index
    %199 = vector.load %arg9[%198, %c0_61] : memref<16x32xf32, #tpu.memory_space<vmem>>, vector<2x32xf32>
    tpu.vector_store %arg9[%198, %c0_61], %196 {strides = array<i32>} : memref<16x32xf32, #tpu.memory_space<vmem>>, vector<2x32xf32>,
    %200 = vector.extract_strided_slice %195 {offsets = [0, 32], sizes = [2, 32], strides = [1, 1]} : vector<2x64xf32> to vector<2x32xf32>
    %c7_i32_62 = arith.constant 7 : i32
    %201 = arith.subi %c7_i32_62, %c4_i32 : i32
    %c2_i32_63 = arith.constant 2 : i32
    %202 = arith.muli %201, %c2_i32_63 : i32
    %203 = arith.index_cast %202 : i32 to index
    %c0_64 = arith.constant 0 : index
    %204 = vector.load %arg10[%203, %c0_64] : memref<16x32xf32, #tpu.memory_space<vmem>>, vector<2x32xf32>
    tpu.vector_store %arg10[%203, %c0_64], %200 {strides = array<i32>} : memref<16x32xf32, #tpu.memory_space<vmem>>, vector<2x32xf32>,
    %c5_i32 = arith.constant 5 : i32
    %c2_i32_65 = arith.constant 2 : i32
    %205 = arith.muli %c5_i32, %c2_i32_65 : i32
    %206 = arith.index_cast %205 : i32 to index
    %c0_66 = arith.constant 0 : index
    %207 = vector.load %arg8[%206, %c0_66] : memref<16x256xf32, #tpu.memory_space<vmem>>, vector<2x256xf32>
    %cst_67 = arith.constant dense<0.000000e+00> : vector<2x256xf32>
    %208 = tpu.matmul %195, %7, %cst_67 {dimension_numbers = #tpu.dot_dimension_numbers<[1], [0], [0], [1], [0, 0, 1, 1], [], []>} : vector<2x64xf32>, vector<64x256xf32>, vector<2x256xf32> -> vector<2x256xf32>
    %209 = arith.addf %207, %208 : vector<2x256xf32>
    %210 = vector.extract_strided_slice %209 {offsets = [0, 0], sizes = [2, 64], strides = [1, 1]} : vector<2x256xf32> to vector<2x64xf32>
    %211 = arith.negf %210 : vector<2x64xf32>
    %212 = math.exp %211 : vector<2x64xf32>
    %cst_68 = arith.constant 1.000000e+00 : f32
    %213 = vector.broadcast %cst_68 : f32 to vector<2x64xf32>
    %214 = arith.addf %213, %212 : vector<2x64xf32>
    %215 = arith.divf %213, %214 : vector<2x64xf32>
    %216 = vector.extract_strided_slice %209 {offsets = [0, 64], sizes = [2, 64], strides = [1, 1]} : vector<2x256xf32> to vector<2x64xf32>
    %217 = arith.negf %216 : vector<2x64xf32>
    %218 = math.exp %217 : vector<2x64xf32>
    %cst_69 = arith.constant 1.000000e+00 : f32
    %219 = vector.broadcast %cst_69 : f32 to vector<2x64xf32>
    %220 = arith.addf %219, %218 : vector<2x64xf32>
    %221 = arith.divf %219, %220 : vector<2x64xf32>
    %222 = vector.extract_strided_slice %209 {offsets = [0, 128], sizes = [2, 64], strides = [1, 1]} : vector<2x256xf32> to vector<2x64xf32>
    %223 = math.tanh %222 : vector<2x64xf32>
    %224 = vector.extract_strided_slice %209 {offsets = [0, 192], sizes = [2, 64], strides = [1, 1]} : vector<2x256xf32> to vector<2x64xf32>
    %225 = arith.negf %224 : vector<2x64xf32>
    %226 = math.exp %225 : vector<2x64xf32>
    %cst_70 = arith.constant 1.000000e+00 : f32
    %227 = vector.broadcast %cst_70 : f32 to vector<2x64xf32>
    %228 = arith.addf %227, %226 : vector<2x64xf32>
    %229 = arith.divf %227, %228 : vector<2x64xf32>
    %230 = arith.mulf %221, %193 : vector<2x64xf32>
    %231 = arith.mulf %215, %223 : vector<2x64xf32>
    %232 = arith.addf %230, %231 : vector<2x64xf32>
    %233 = math.tanh %232 : vector<2x64xf32>
    %234 = arith.mulf %229, %233 : vector<2x64xf32>
    %235 = vector.extract_strided_slice %234 {offsets = [0, 0], sizes = [2, 32], strides = [1, 1]} : vector<2x64xf32> to vector<2x32xf32>
    %c2_i32_71 = arith.constant 2 : i32
    %236 = arith.muli %c5_i32, %c2_i32_71 : i32
    %237 = arith.index_cast %236 : i32 to index
    %c0_72 = arith.constant 0 : index
    %238 = vector.load %arg9[%237, %c0_72] : memref<16x32xf32, #tpu.memory_space<vmem>>, vector<2x32xf32>
    tpu.vector_store %arg9[%237, %c0_72], %235 {strides = array<i32>} : memref<16x32xf32, #tpu.memory_space<vmem>>, vector<2x32xf32>,
    %239 = vector.extract_strided_slice %234 {offsets = [0, 32], sizes = [2, 32], strides = [1, 1]} : vector<2x64xf32> to vector<2x32xf32>
    %c7_i32_73 = arith.constant 7 : i32
    %240 = arith.subi %c7_i32_73, %c5_i32 : i32
    %c2_i32_74 = arith.constant 2 : i32
    %241 = arith.muli %240, %c2_i32_74 : i32
    %242 = arith.index_cast %241 : i32 to index
    %c0_75 = arith.constant 0 : index
    %243 = vector.load %arg10[%242, %c0_75] : memref<16x32xf32, #tpu.memory_space<vmem>>, vector<2x32xf32>
    tpu.vector_store %arg10[%242, %c0_75], %239 {strides = array<i32>} : memref<16x32xf32, #tpu.memory_space<vmem>>, vector<2x32xf32>,
    %c6_i32 = arith.constant 6 : i32
    %c2_i32_76 = arith.constant 2 : i32
    %244 = arith.muli %c6_i32, %c2_i32_76 : i32
    %245 = arith.index_cast %244 : i32 to index
    %c0_77 = arith.constant 0 : index
    %246 = vector.load %arg8[%245, %c0_77] : memref<16x256xf32, #tpu.memory_space<vmem>>, vector<2x256xf32>
    %cst_78 = arith.constant dense<0.000000e+00> : vector<2x256xf32>
    %247 = tpu.matmul %234, %7, %cst_78 {dimension_numbers = #tpu.dot_dimension_numbers<[1], [0], [0], [1], [0, 0, 1, 1], [], []>} : vector<2x64xf32>, vector<64x256xf32>, vector<2x256xf32> -> vector<2x256xf32>
    %248 = arith.addf %246, %247 : vector<2x256xf32>
    %249 = vector.extract_strided_slice %248 {offsets = [0, 0], sizes = [2, 64], strides = [1, 1]} : vector<2x256xf32> to vector<2x64xf32>
    %250 = arith.negf %249 : vector<2x64xf32>
    %251 = math.exp %250 : vector<2x64xf32>
    %cst_79 = arith.constant 1.000000e+00 : f32
    %252 = vector.broadcast %cst_79 : f32 to vector<2x64xf32>
    %253 = arith.addf %252, %251 : vector<2x64xf32>
    %254 = arith.divf %252, %253 : vector<2x64xf32>
    %255 = vector.extract_strided_slice %248 {offsets = [0, 64], sizes = [2, 64], strides = [1, 1]} : vector<2x256xf32> to vector<2x64xf32>
    %256 = arith.negf %255 : vector<2x64xf32>
    %257 = math.exp %256 : vector<2x64xf32>
    %cst_80 = arith.constant 1.000000e+00 : f32
    %258 = vector.broadcast %cst_80 : f32 to vector<2x64xf32>
    %259 = arith.addf %258, %257 : vector<2x64xf32>
    %260 = arith.divf %258, %259 : vector<2x64xf32>
    %261 = vector.extract_strided_slice %248 {offsets = [0, 128], sizes = [2, 64], strides = [1, 1]} : vector<2x256xf32> to vector<2x64xf32>
    %262 = math.tanh %261 : vector<2x64xf32>
    %263 = vector.extract_strided_slice %248 {offsets = [0, 192], sizes = [2, 64], strides = [1, 1]} : vector<2x256xf32> to vector<2x64xf32>
    %264 = arith.negf %263 : vector<2x64xf32>
    %265 = math.exp %264 : vector<2x64xf32>
    %cst_81 = arith.constant 1.000000e+00 : f32
    %266 = vector.broadcast %cst_81 : f32 to vector<2x64xf32>
    %267 = arith.addf %266, %265 : vector<2x64xf32>
    %268 = arith.divf %266, %267 : vector<2x64xf32>
    %269 = arith.mulf %260, %232 : vector<2x64xf32>
    %270 = arith.mulf %254, %262 : vector<2x64xf32>
    %271 = arith.addf %269, %270 : vector<2x64xf32>
    %272 = math.tanh %271 : vector<2x64xf32>
    %273 = arith.mulf %268, %272 : vector<2x64xf32>
    %274 = vector.extract_strided_slice %273 {offsets = [0, 0], sizes = [2, 32], strides = [1, 1]} : vector<2x64xf32> to vector<2x32xf32>
    %c2_i32_82 = arith.constant 2 : i32
    %275 = arith.muli %c6_i32, %c2_i32_82 : i32
    %276 = arith.index_cast %275 : i32 to index
    %c0_83 = arith.constant 0 : index
    %277 = vector.load %arg9[%276, %c0_83] : memref<16x32xf32, #tpu.memory_space<vmem>>, vector<2x32xf32>
    tpu.vector_store %arg9[%276, %c0_83], %274 {strides = array<i32>} : memref<16x32xf32, #tpu.memory_space<vmem>>, vector<2x32xf32>,
    %278 = vector.extract_strided_slice %273 {offsets = [0, 32], sizes = [2, 32], strides = [1, 1]} : vector<2x64xf32> to vector<2x32xf32>
    %c7_i32_84 = arith.constant 7 : i32
    %279 = arith.subi %c7_i32_84, %c6_i32 : i32
    %c2_i32_85 = arith.constant 2 : i32
    %280 = arith.muli %279, %c2_i32_85 : i32
    %281 = arith.index_cast %280 : i32 to index
    %c0_86 = arith.constant 0 : index
    %282 = vector.load %arg10[%281, %c0_86] : memref<16x32xf32, #tpu.memory_space<vmem>>, vector<2x32xf32>
    tpu.vector_store %arg10[%281, %c0_86], %278 {strides = array<i32>} : memref<16x32xf32, #tpu.memory_space<vmem>>, vector<2x32xf32>,
    %c7_i32_87 = arith.constant 7 : i32
    %c2_i32_88 = arith.constant 2 : i32
    %283 = arith.muli %c7_i32_87, %c2_i32_88 : i32
    %284 = arith.index_cast %283 : i32 to index
    %c0_89 = arith.constant 0 : index
    %285 = vector.load %arg8[%284, %c0_89] : memref<16x256xf32, #tpu.memory_space<vmem>>, vector<2x256xf32>
    %cst_90 = arith.constant dense<0.000000e+00> : vector<2x256xf32>
    %286 = tpu.matmul %273, %7, %cst_90 {dimension_numbers = #tpu.dot_dimension_numbers<[1], [0], [0], [1], [0, 0, 1, 1], [], []>} : vector<2x64xf32>, vector<64x256xf32>, vector<2x256xf32> -> vector<2x256xf32>
    %287 = arith.addf %285, %286 : vector<2x256xf32>
    %288 = vector.extract_strided_slice %287 {offsets = [0, 0], sizes = [2, 64], strides = [1, 1]} : vector<2x256xf32> to vector<2x64xf32>
    %289 = arith.negf %288 : vector<2x64xf32>
    %290 = math.exp %289 : vector<2x64xf32>
    %cst_91 = arith.constant 1.000000e+00 : f32
    %291 = vector.broadcast %cst_91 : f32 to vector<2x64xf32>
    %292 = arith.addf %291, %290 : vector<2x64xf32>
    %293 = arith.divf %291, %292 : vector<2x64xf32>
    %294 = vector.extract_strided_slice %287 {offsets = [0, 64], sizes = [2, 64], strides = [1, 1]} : vector<2x256xf32> to vector<2x64xf32>
    %295 = arith.negf %294 : vector<2x64xf32>
    %296 = math.exp %295 : vector<2x64xf32>
    %cst_92 = arith.constant 1.000000e+00 : f32
    %297 = vector.broadcast %cst_92 : f32 to vector<2x64xf32>
    %298 = arith.addf %297, %296 : vector<2x64xf32>
    %299 = arith.divf %297, %298 : vector<2x64xf32>
    %300 = vector.extract_strided_slice %287 {offsets = [0, 128], sizes = [2, 64], strides = [1, 1]} : vector<2x256xf32> to vector<2x64xf32>
    %301 = math.tanh %300 : vector<2x64xf32>
    %302 = vector.extract_strided_slice %287 {offsets = [0, 192], sizes = [2, 64], strides = [1, 1]} : vector<2x256xf32> to vector<2x64xf32>
    %303 = arith.negf %302 : vector<2x64xf32>
    %304 = math.exp %303 : vector<2x64xf32>
    %cst_93 = arith.constant 1.000000e+00 : f32
    %305 = vector.broadcast %cst_93 : f32 to vector<2x64xf32>
    %306 = arith.addf %305, %304 : vector<2x64xf32>
    %307 = arith.divf %305, %306 : vector<2x64xf32>
    %308 = arith.mulf %299, %271 : vector<2x64xf32>
    %309 = arith.mulf %293, %301 : vector<2x64xf32>
    %310 = arith.addf %308, %309 : vector<2x64xf32>
    %311 = math.tanh %310 : vector<2x64xf32>
    %312 = arith.mulf %307, %311 : vector<2x64xf32>
    %313 = vector.extract_strided_slice %312 {offsets = [0, 0], sizes = [2, 32], strides = [1, 1]} : vector<2x64xf32> to vector<2x32xf32>
    %c2_i32_94 = arith.constant 2 : i32
    %314 = arith.muli %c7_i32_87, %c2_i32_94 : i32
    %315 = arith.index_cast %314 : i32 to index
    %c0_95 = arith.constant 0 : index
    %316 = vector.load %arg9[%315, %c0_95] : memref<16x32xf32, #tpu.memory_space<vmem>>, vector<2x32xf32>
    tpu.vector_store %arg9[%315, %c0_95], %313 {strides = array<i32>} : memref<16x32xf32, #tpu.memory_space<vmem>>, vector<2x32xf32>,
    %317 = vector.extract_strided_slice %312 {offsets = [0, 32], sizes = [2, 32], strides = [1, 1]} : vector<2x64xf32> to vector<2x32xf32>
    %c7_i32_96 = arith.constant 7 : i32
    %318 = arith.subi %c7_i32_96, %c7_i32_87 : i32
    %c2_i32_97 = arith.constant 2 : i32
    %319 = arith.muli %318, %c2_i32_97 : i32
    %320 = arith.index_cast %319 : i32 to index
    %c0_98 = arith.constant 0 : index
    %321 = vector.load %arg10[%320, %c0_98] : memref<16x32xf32, #tpu.memory_space<vmem>>, vector<2x32xf32>
    tpu.vector_store %arg10[%320, %c0_98], %317 {strides = array<i32>} : memref<16x32xf32, #tpu.memory_space<vmem>>, vector<2x32xf32>,
    %c8_i32 = arith.constant 8 : i32
    %c0_99 = arith.constant 0 : index
    %c0_100 = arith.constant 0 : index
    %322 = vector.load %arg9[%c0_99, %c0_100] : memref<16x32xf32, #tpu.memory_space<vmem>>, vector<16x32xf32>
    %c0_101 = arith.constant 0 : index
    %c0_102 = arith.constant 0 : index
    %323 = vector.load %arg4[%c0_101, %c0_102] : memref<32x128xf32, #tpu.memory_space<vmem>>, vector<32x128xf32>
    %cst_103 = arith.constant dense<0.000000e+00> : vector<16x128xf32>
    %324 = tpu.matmul %322, %323, %cst_103 {dimension_numbers = #tpu.dot_dimension_numbers<[1], [0], [0], [1], [0, 0, 1, 1], [], []>} : vector<16x32xf32>, vector<32x128xf32>, vector<16x128xf32> -> vector<16x128xf32>
    %c0_104 = arith.constant 0 : index
    %c0_105 = arith.constant 0 : index
    %325 = vector.load %arg10[%c0_104, %c0_105] : memref<16x32xf32, #tpu.memory_space<vmem>>, vector<16x32xf32>
    %c0_106 = arith.constant 0 : index
    %c0_107 = arith.constant 0 : index
    %326 = vector.load %arg5[%c0_106, %c0_107] : memref<32x128xf32, #tpu.memory_space<vmem>>, vector<32x128xf32>
    %cst_108 = arith.constant dense<0.000000e+00> : vector<16x128xf32>
    %327 = tpu.matmul %325, %326, %cst_108 {dimension_numbers = #tpu.dot_dimension_numbers<[1], [0], [0], [1], [0, 0, 1, 1], [], []>} : vector<16x32xf32>, vector<32x128xf32>, vector<16x128xf32> -> vector<16x128xf32>
    %328 = arith.addf %324, %327 : vector<16x128xf32>
    %c0_109 = arith.constant 0 : index
    %c0_110 = arith.constant 0 : index
    %329 = vector.load %arg6[%c0_109, %c0_110] : memref<1x128xf32, #tpu.memory_space<vmem>>, vector<1x128xf32>
    %330 = vector.broadcast %329 : vector<1x128xf32> to vector<16x128xf32>
    %331 = arith.addf %328, %330 : vector<16x128xf32>
    %c0_111 = arith.constant 0 : index
    %c0_112 = arith.constant 0 : index
    %332 = vector.load %arg7[%c0_111, %c0_112] : memref<16x128xf32, #tpu.memory_space<vmem>>, vector<16x128xf32>
    tpu.vector_store %arg7[%c0_111, %c0_112], %331 {strides = array<i32>} : memref<16x128xf32, #tpu.memory_space<vmem>>, vector<16x128xf32>,
    return
  }
}

</mosaic_0001>

<llo_original>
// kernel: tpu_custom_call.1
$region0: #{tpu_custom_call.1}
  #allocation0 [shape = 'u32[]', space=smem, size = 0x4, offset = 0x4, fixed_abs, tag = 'smem constant byte address 0x4 - core index']
  #allocation1 [shape = 'u32[144,128]{1,0:T(1,128)}', space=vmem, size = 0x12000, scoped, tag = 'internal scratch']
  #allocation2 [shape = 'f32[16,256]{1,0:T(8,128)}', space=vmem, size = 0x4000, scoped, tag = 'scratch operand']
  #allocation3 [shape = 'f32[16,32]{1,0:T(8,128)}', space=vmem, size = 0x2000, scoped, tag = 'scratch operand']
  #allocation4 [shape = 'f32[16,32]{1,0:T(8,128)}', space=vmem, size = 0x2000, scoped, tag = 'scratch operand']
  %s0 = inlined_call_operand.hbm [shape: f32[16,32], index: 0, kind: input, shape index: {}]
  %s1 = inlined_call_operand.hbm [shape: f32[32,256], index: 1, kind: input, shape index: {}]
  %s2 = inlined_call_operand.vmem [shape: f32[1,256], index: 2, kind: input, shape index: {}]
  %s3 = inlined_call_operand.hbm [shape: f32[64,256], index: 3, kind: input, shape index: {}]
  %s4 = inlined_call_operand.hbm [shape: f32[32,128], index: 4, kind: input, shape index: {}]
  %s5 = inlined_call_operand.hbm [shape: f32[32,128], index: 5, kind: input, shape index: {}]
  %s6 = inlined_call_operand.vmem [shape: f32[1,128], index: 6, kind: input, shape index: {}]
  %s7 = inlined_call_operand.hbm [shape: f32[16,128], index: 7, kind: output, shape index: {}]
  %s8 = sld [smem:[#allocation0]]
  $region58: #{tpu_custom_call.1} parent=0
    _
  %s10 = ssub.s32 1, %s8
  %s11 = scalar_select 0, %s10, %s8
  $region1: #{tpu_custom_call.1} parent=0
    #allocation5 [shape = 'u8[8192]{0}', space=vmem, size = 0x2000, scoped, tag = 'input window, operand 0, single buffered']
    #allocation6 [shape = 's32[1]{0}', space=sflag, size = 0x4, scoped, tag = 'scoped memory for tpu_custom_call.1']
    #allocation7 [shape = 's32[1]{0}', space=sflag, size = 0x4, scoped, tag = 'scoped memory for tpu_custom_call.1']
    #allocation8 [shape = 'u8[32768]{0}', space=vmem, size = 0x8000, scoped, tag = 'input window, operand 1, single buffered']
    #allocation9 [shape = 's32[1]{0}', space=sflag, size = 0x4, scoped, tag = 'scoped memory for tpu_custom_call.1']
    #allocation10 [shape = 'u8[65536]{0}', space=vmem, size = 0x10000, scoped, tag = 'input window, operand 3, single buffered']
    #allocation11 [shape = 'u8[16384]{0}', space=vmem, size = 0x4000, scoped, tag = 'input window, operand 4, single buffered']
    #allocation12 [shape = 's32[1]{0}', space=sflag, size = 0x4, scoped, tag = 'scoped memory for tpu_custom_call.1']
    #allocation13 [shape = 'u8[16384]{0}', space=vmem, size = 0x4000, scoped, tag = 'input window, operand 5, single buffered']
    #allocation14 [shape = 'u8[8192]{0}', space=vmem, size = 0x2000, scoped, tag = 'output window, operand 0, single buffered']
    %12 = vsyncpa [#allocation6], 0
    %13 = vsyncpa [#allocation9], 0
    %14 = vsyncpa [#allocation12], 0
    %15 = vsyncpa [#allocation7], 0
    // Predicated region
    $region2: #{tpu_custom_call.1} parent=1 // pred_check
      _
    $region3: #{tpu_custom_call.1} parent=1 // pred_check_branch
      %17 = sbr.rel (0) target = $region5
    $region4: #{tpu_custom_call.1} parent=1 // pred_region
      %s19 = ssub.s32 256, 256
      %20 = vsyncadd [#allocation6], %s19
      %s21 = sshll.u32 [#allocation5], 4
      %s22 = int_to_ptr.vmem [resolvable:$true] %s21
      %27 = dma.hbm_to_vmem [thread:$0]  %s0, 256, %s22, [#allocation6], 128, 128, 8
    $region5: #{tpu_custom_call.1} parent=1 // pred_fallthru
      _
    // Predicated region
    $region6: #{tpu_custom_call.1} parent=1 // pred_check
      _
    $region7: #{tpu_custom_call.1} parent=1 // pred_check_branch
      %29 = sbr.rel (0) target = $region9
    $region8: #{tpu_custom_call.1} parent=1 // pred_region
      %s31 = ssub.s32 1024, 1024
      %32 = vsyncadd [#allocation9], %s31
      %s33 = sshll.u32 [#allocation8], 4
      %s34 = int_to_ptr.vmem [resolvable:$true] %s33
      %39 = dma.hbm_to_vmem [thread:$0]  %s1, 1024, %s34, [#allocation9], 256, 256, 16
    $region9: #{tpu_custom_call.1} parent=1 // pred_fallthru
      _
    // Predicated region
    $region10: #{tpu_custom_call.1} parent=1 // pred_check
      _
    $region11: #{tpu_custom_call.1} parent=1 // pred_check_branch
      %41 = sbr.rel (0) target = $region13
    $region12: #{tpu_custom_call.1} parent=1 // pred_region
      _
    $region13: #{tpu_custom_call.1} parent=1 // pred_fallthru
      _
    // Predicated region
    $region14: #{tpu_custom_call.1} parent=1 // pred_check
      _
    $region15: #{tpu_custom_call.1} parent=1 // pred_check_branch
      %43 = sbr.rel (0) target = $region17
    $region16: #{tpu_custom_call.1} parent=1 // pred_region
      %s45 = ssub.s32 2048, 2048
      %46 = vsyncadd [#allocation9], %s45
      %s47 = sshll.u32 [#allocation10], 4
      %s48 = int_to_ptr.vmem [resolvable:$true] %s47
      %53 = dma.hbm_to_vmem [thread:$0]  %s3, 2048, %s48, [#allocation9], 256, 256, 16
    $region17: #{tpu_custom_call.1} parent=1 // pred_fallthru
      _
    // Predicated region
    $region18: #{tpu_custom_call.1} parent=1 // pred_check
      _
    $region19: #{tpu_custom_call.1} parent=1 // pred_check_branch
      %55 = sbr.rel (0) target = $region21
    $region20: #{tpu_custom_call.1} parent=1 // pred_region
      %s57 = ssub.s32 512, 512
      %58 = vsyncadd [#allocation12], %s57
      %s59 = sshll.u32 [#allocation11], 4
      %s60 = int_to_ptr.vmem [resolvable:$true] %s59
      %65 = dma.hbm_to_vmem [thread:$0]  %s4, 512, %s60, [#allocation12], 128, 128, 8
    $region21: #{tpu_custom_call.1} parent=1 // pred_fallthru
      _
    // Predicated region
    $region22: #{tpu_custom_call.1} parent=1 // pred_check
      _
    $region23: #{tpu_custom_call.1} parent=1 // pred_check_branch
      %67 = sbr.rel (0) target = $region25
    $region24: #{tpu_custom_call.1} parent=1 // pred_region
      %s69 = ssub.s32 512, 512
      %70 = vsyncadd [#allocation12], %s69
      %s71 = sshll.u32 [#allocation13], 4
      %s72 = int_to_ptr.vmem [resolvable:$true] %s71
      %77 = dma.hbm_to_vmem [thread:$0]  %s5, 512, %s72, [#allocation12], 128, 128, 8
    $region25: #{tpu_custom_call.1} parent=1 // pred_fallthru
      _
    // Predicated region
    $region26: #{tpu_custom_call.1} parent=1 // pred_check
      _
    $region27: #{tpu_custom_call.1} parent=1 // pred_check_branch
      %79 = sbr.rel (0) target = $region29
    $region28: #{tpu_custom_call.1} parent=1 // pred_region
      _
    $region29: #{tpu_custom_call.1} parent=1 // pred_fallthru
      _
    // Predicated region
    $region30: #{tpu_custom_call.1} parent=1 // pred_check
      _
    $region31: #{tpu_custom_call.1} parent=1 // pred_check_branch
      %81 = sbr.rel (0) target = $region33
    $region32: #{tpu_custom_call.1} parent=1 // pred_region
      %82 = dma.done [#allocation6], 256
    $region33: #{tpu_custom_call.1} parent=1 // pred_fallthru
      _
    // Predicated region
    $region34: #{tpu_custom_call.1} parent=1 // pred_check
      _
    $region35: #{tpu_custom_call.1} parent=1 // pred_check_branch
      %84 = sbr.rel (0) target = $region37
    $region36: #{tpu_custom_call.1} parent=1 // pred_region
      %85 = dma.done [#allocation9], 1024
    $region37: #{tpu_custom_call.1} parent=1 // pred_fallthru
      _
    // Predicated region
    $region38: #{tpu_custom_call.1} parent=1 // pred_check
      _
    $region39: #{tpu_custom_call.1} parent=1 // pred_check_branch
      %87 = sbr.rel (0) target = $region41
    $region40: #{tpu_custom_call.1} parent=1 // pred_region
      %88 = dma.done [#allocation9], 2048
    $region41: #{tpu_custom_call.1} parent=1 // pred_fallthru
      _
    // Predicated region
    $region42: #{tpu_custom_call.1} parent=1 // pred_check
      _
    $region43: #{tpu_custom_call.1} parent=1 // pred_check_branch
      %90 = sbr.rel (0) target = $region45
    $region44: #{tpu_custom_call.1} parent=1 // pred_region
      %91 = dma.done [#allocation12], 512
    $region45: #{tpu_custom_call.1} parent=1 // pred_fallthru
      _
    // Predicated region
    $region46: #{tpu_custom_call.1} parent=1 // pred_check
      _
    $region47: #{tpu_custom_call.1} parent=1 // pred_check_branch
      %93 = sbr.rel (0) target = $region49
    $region48: #{tpu_custom_call.1} parent=1 // pred_region
      %94 = dma.done [#allocation12], 512
    $region49: #{tpu_custom_call.1} parent=1 // pred_fallthru
      _
    %v95 = vld [vmem:[#allocation5] sm:$0xff]
    %v96 = vld [vmem:[#allocation5 + $0x8] sm:$0xff]
    %v97 = vld [vmem:[#allocation8] sm:$0xff]
    %v98 = vld [vmem:[#allocation8 + $0x8] sm:$0xff]
    %v99 = vld [vmem:[#allocation8 + $0x10] sm:$0xff]
    %v100 = vld [vmem:[#allocation8 + $0x18] sm:$0xff]
    %v101 = vld [vmem:[#allocation8 + $0x20] sm:$0xff]
    %v102 = vld [vmem:[#allocation8 + $0x28] sm:$0xff]
    %v103 = vld [vmem:[#allocation8 + $0x30] sm:$0xff]
    %v104 = vld [vmem:[#allocation8 + $0x38] sm:$0xff]
    %v105 = vld [vmem:[%s2] sm:$0x3]
    %v107 = vlaneseq
    %v108 = vshrl.u32 %v107, 7
    %v109 = vsub.s32 0, %v108
    %v110 = vrot.slane %v105, %v109
    %v111 = vlaneseq
    %v112 = vshrl.u32 %v111, 7
    %v113 = vsub.s32 1, %v112
    %v114 = vrot.slane %v105, %v113
    %vm117 = vcmask 261120
    %v119 = vsel %vm117, %v95, 0
    %v122 = vsel %vm117, %v96, 0
    %124 = vmatprep.subr.mxu0 %v98
    %125 = vmatpush1.msra.mxu0 %v97
    %126 = vmatprep.subr.mxu0 %v100
    %127 = vmatpush1.msra.mxu0 %v99
    %128 = vmatprep.subr.mxu0 %v102
    %129 = vmatpush1.msra.mxu0 %v101
    %130 = vmatprep.subr.mxu0 %v104
    %131 = vmatpush1.msra.mxu0 %v103
    %132 = vmatprep.subr.mxu0 0.0
    %133 = vmatpush1.msra.mxu0 0.0
    %134 = vmatprep.subr.mxu0 0.0
    %135 = vmatpush1.msra.mxu0 0.0
    %136 = vmatprep.subr.mxu0 0.0
    %137 = vmatpush1.msra.mxu0 0.0
    %138 = vmatprep.subr.mxu0 0.0
    %139 = vmatpush1.msra.mxu0 0.0
    %140 = vmatprep.subr.mxu0 0.0
    %141 = vmatpush1.msra.mxu0 0.0
    %142 = vmatprep.subr.mxu0 0.0
    %143 = vmatpush1.msra.mxu0 0.0
    %144 = vmatprep.subr.mxu0 0.0
    %145 = vmatpush1.msra.mxu0 0.0
    %146 = vmatprep.subr.mxu0 0.0
    %147 = vmatpush1.msra.mxu0 0.0
    %148 = vmatprep.subr.mxu0 0.0
    %149 = vmatpush1.msra.mxu0 0.0
    %150 = vmatprep.subr.mxu0 0.0
    %151 = vmatpush1.msra.mxu0 0.0
    %152 = vmatprep.subr.mxu0 0.0
    %153 = vmatpush1.msra.mxu0 0.0
    %154 = vmatprep.subr.mxu0 0.0
    %155 = vmatpush1.msra.mxu0 0.0
    %156 = vmatprep.subr.mxu0 0.0
    %157 = vmatpush1.msra.mxu0 0.0
    %158 = vmatprep.subr.mxu0 0.0
    %159 = vmatpush1.msra.mxu0 0.0
    %160 = vmatprep.subr.mxu0 0.0
    %161 = vmatpush1.msra.mxu0 0.0
    %162 = vmatprep.subr.mxu0 0.0
    %163 = vmatpush1.msra.mxu0 0.0
    %164 = vmatprep.subr.mxu0 0.0
    %165 = vmatpush1.msra.mxu0 0.0
    %166 = vmatprep.subr.mxu0 0.0
    %167 = vmatpush1.msra.mxu0 0.0
    %168 = vmatprep.subr.mxu0 0.0
    %169 = vmatpush1.msra.mxu0 0.0
    %170 = vmatprep.subr.mxu0 0.0
    %171 = vmatpush1.msra.mxu0 0.0
    %172 = vmatprep.subr.mxu0 0.0
    %173 = vmatpush1.msra.mxu0 0.0
    %174 = vmatprep.subr.mxu0 0.0
    %175 = vmatpush1.msra.mxu0 0.0
    %176 = vmatprep.subr.mxu0 0.0
    %177 = vmatpush1.msra.mxu0 0.0
    %178 = vmatprep.subr.mxu0 0.0
    %179 = vmatpush1.msra.mxu0 0.0
    %180 = vmatprep.subr.mxu0 0.0
    %181 = vmatpush1.msra.mxu0 0.0
    %182 = vmatprep.subr.mxu0 0.0
    %183 = vmatpush1.msra.mxu0 0.0
    %184 = vmatprep.subr.mxu0 0.0
    %185 = vmatpush1.msra.mxu0 0.0
    %186 = vmatprep.subr.mxu0 0.0
    %187 = vmatpush1.msra.mxu0 0.0
    %188 = vmatprep.mubr.f32.mxu0 0.0
    %189 = vmatmul.mubr.f32.gmra.mrb[0].mxu0 %v119
    %v190 = vpop.f32.mrb[0].mxu0
    %v191 = vadd.f32 %v110, %v190
    %v192 = vpop.f32.mrb[0].mxu0
    %v193 = vadd.f32 %v114, %v192
    %194 = vmatprep.mubr.f32.mxu0 0.0
    %195 = vmatmul.mubr.f32.gmra.mrb[0].mxu0 %v122
    %v196 = vpop.f32.mrb[0].mxu0
    %v197 = vadd.f32 %v110, %v196
    %v198 = vpop.f32.mrb[0].mxu0
    %v199 = vadd.f32 %v114, %v198
    %200 = vdwg.mxu0
    %201 = vst [vmem:[#allocation2] sm:$0xff] %v191
    %202 = vst [vmem:[#allocation2 + $0x8] sm:$0xff] %v193
    %203 = vst [vmem:[#allocation2 + $0x10] sm:$0xff] %v197
    %204 = vst [vmem:[#allocation2 + $0x18] sm:$0xff] %v199
    %v205 = vld [vmem:[#allocation10] sm:$0xff]
    %v206 = vld [vmem:[#allocation10 + $0x8] sm:$0xff]
    %v207 = vld [vmem:[#allocation10 + $0x10] sm:$0xff]
    %v208 = vld [vmem:[#allocation10 + $0x18] sm:$0xff]
    %v209 = vld [vmem:[#allocation10 + $0x20] sm:$0xff]
    %v210 = vld [vmem:[#allocation10 + $0x28] sm:$0xff]
    %v211 = vld [vmem:[#allocation10 + $0x30] sm:$0xff]
    %v212 = vld [vmem:[#allocation10 + $0x38] sm:$0xff]
    %v213 = vld [vmem:[#allocation10 + $0x40] sm:$0xff]
    %v214 = vld [vmem:[#allocation10 + $0x48] sm:$0xff]
    %v215 = vld [vmem:[#allocation10 + $0x50] sm:$0xff]
    %v216 = vld [vmem:[#allocation10 + $0x58] sm:$0xff]
    %v217 = vld [vmem:[#allocation10 + $0x60] sm:$0xff]
    %v218 = vld [vmem:[#allocation10 + $0x68] sm:$0xff]
    %v219 = vld [vmem:[#allocation10 + $0x70] sm:$0xff]
    %v220 = vld [vmem:[#allocation10 + $0x78] sm:$0xff]
    %v221 = vld [vmem:[#allocation2] sm:$0x3]
    %v222 = vld [vmem:[#allocation2 + $0x8] sm:$0x3]
    %vm223 = vcmask 523264
    %v225 = vsel %vm223, 0.0, 0
    %227 = vmatprep.subr.mxu0 %v206
    %228 = vmatpush1.msra.mxu0 %v205
    %229 = vmatprep.subr.mxu0 %v208
    %230 = vmatpush1.msra.mxu0 %v207
    %231 = vmatprep.subr.mxu0 %v210
    %232 = vmatpush1.msra.mxu0 %v209
    %233 = vmatprep.subr.mxu0 %v212
    %234 = vmatpush1.msra.mxu0 %v211
    %235 = vmatprep.subr.mxu0 %v214
    %236 = vmatpush1.msra.mxu0 %v213
    %237 = vmatprep.subr.mxu0 %v216
    %238 = vmatpush1.msra.mxu0 %v215
    %239 = vmatprep.subr.mxu0 %v218
    %240 = vmatpush1.msra.mxu0 %v217
    %241 = vmatprep.subr.mxu0 %v220
    %242 = vmatpush1.msra.mxu0 %v219
    %243 = vmatprep.subr.mxu0 0.0
    %244 = vmatpush1.msra.mxu0 0.0
    %245 = vmatprep.subr.mxu0 0.0
    %246 = vmatpush1.msra.mxu0 0.0
    %247 = vmatprep.subr.mxu0 0.0
    %248 = vmatpush1.msra.mxu0 0.0
    %249 = vmatprep.subr.mxu0 0.0
    %250 = vmatpush1.msra.mxu0 0.0
    %251 = vmatprep.subr.mxu0 0.0
    %252 = vmatpush1.msra.mxu0 0.0
    %253 = vmatprep.subr.mxu0 0.0
    %254 = vmatpush1.msra.mxu0 0.0
    %255 = vmatprep.subr.mxu0 0.0
    %256 = vmatpush1.msra.mxu0 0.0
    %257 = vmatprep.subr.mxu0 0.0
    %258 = vmatpush1.msra.mxu0 0.0
    %259 = vmatprep.subr.mxu0 0.0
    %260 = vmatpush1.msra.mxu0 0.0
    %261 = vmatprep.subr.mxu0 0.0
    %262 = vmatpush1.msra.mxu0 0.0
    %263 = vmatprep.subr.mxu0 0.0
    %264 = vmatpush1.msra.mxu0 0.0
    %265 = vmatprep.subr.mxu0 0.0
    %266 = vmatpush1.msra.mxu0 0.0
    %267 = vmatprep.subr.mxu0 0.0
    %268 = vmatpush1.msra.mxu0 0.0
    %269 = vmatprep.subr.mxu0 0.0
    %270 = vmatpush1.msra.mxu0 0.0
    %271 = vmatprep.subr.mxu0 0.0
    %272 = vmatpush1.msra.mxu0 0.0
    %273 = vmatprep.subr.mxu0 0.0
    %274 = vmatpush1.msra.mxu0 0.0
    %275 = vmatprep.subr.mxu0 0.0
    %276 = vmatpush1.msra.mxu0 0.0
    %277 = vmatprep.subr.mxu0 0.0
    %278 = vmatpush1.msra.mxu0 0.0
    %279 = vmatprep.subr.mxu0 0.0
    %280 = vmatpush1.msra.mxu0 0.0
    %281 = vmatprep.subr.mxu0 0.0
    %282 = vmatpush1.msra.mxu0 0.0
    %283 = vmatprep.subr.mxu0 0.0
    %284 = vmatpush1.msra.mxu0 0.0
    %285 = vmatprep.subr.mxu0 0.0
    %286 = vmatpush1.msra.mxu0 0.0
    %287 = vmatprep.subr.mxu0 0.0
    %288 = vmatpush1.msra.mxu0 0.0
    %289 = vmatprep.subr.mxu0 0.0
    %290 = vmatpush1.msra.mxu0 0.0
    %291 = vmatprep.mubr.f32.mxu0 0.0
    %292 = vmatmul.mubr.f32.gmra.mrb[0].mxu0 %v225
    %v293 = vpop.f32.mrb[0].mxu0
    %v294 = vadd.f32 0.0, %v293
    %v295 = vpop.f32.mrb[0].mxu0
    %v296 = vadd.f32 0.0, %v295
    %297 = vdwg.mxu0
    %v298 = vadd.f32 %v221, %v294
    %v299 = vadd.f32 %v222, %v296
    %v300 = vxor.u32 %v298, 2147483648
    %v301 = vmul.f32 %v300, 1.442695
    %v302 = vpow.pop %v301
    %v303 = vadd.f32 %v302, 1.0
    %v304 = vrcp.pop %v303
    %v305 = vmul.f32 1.0, %v304
    %v306 = vtanh.pop %v299
    %v307 = vxor.u32 %v299, 2147483648
    %v308 = vmul.f32 %v307, 1.442695
    %v309 = vpow.pop %v308
    %v310 = vadd.f32 %v309, 1.0
    %v311 = vrcp.pop %v310
    %v312 = vmul.f32 1.0, %v311
    %v313 = vmul.f32 %v305, 0.0
    %v314 = vmul.f32 %v305, %v306
    %316 = vrot.lane.b32.xlu0 %v314, 64
    %v317 = vpop.permute.xlu0 %316
    %v319 = vadd.f32 %v313, %v317
    %v320 = vtanh.pop %v319
    %v321 = vmul.f32 %v312, %v320
    %323 = vrot.lane.b32.xlu0 %v321, 64
    %v324 = vpop.permute.xlu0 %323
    %vm326 = vcmask 254976
    %327 = vst.msk [vmem:[#allocation3] sm:$0x3] %vm326, %v324
    %328 = vrot.lane.b32.xlu0 %v321, 32
    %v329 = vpop.permute.xlu0 %328
    %331 = vst.msk [vmem:[#allocation4 + $0xe] sm:$0x3] %vm326, %v329
    %v332 = vld [vmem:[#allocation2] sm:$0xc]
    %v333 = vld [vmem:[#allocation2 + $0x8] sm:$0xc]
    %v334 = vsel %vm223, %v324, 0
    %336 = vmatprep.subr.mxu0 %v206
    %337 = vmatpush1.msra.mxu0 %v205
    %338 = vmatprep.subr.mxu0 %v208
    %339 = vmatpush1.msra.mxu0 %v207
    %340 = vmatprep.subr.mxu0 %v210
    %341 = vmatpush1.msra.mxu0 %v209
    %342 = vmatprep.subr.mxu0 %v212
    %343 = vmatpush1.msra.mxu0 %v211
    %344 = vmatprep.subr.mxu0 %v214
    %345 = vmatpush1.msra.mxu0 %v213
    %346 = vmatprep.subr.mxu0 %v216
    %347 = vmatpush1.msra.mxu0 %v215
    %348 = vmatprep.subr.mxu0 %v218
    %349 = vmatpush1.msra.mxu0 %v217
    %350 = vmatprep.subr.mxu0 %v220
    %351 = vmatpush1.msra.mxu0 %v219
    %352 = vmatprep.subr.mxu0 0.0
    %353 = vmatpush1.msra.mxu0 0.0
    %354 = vmatprep.subr.mxu0 0.0
    %355 = vmatpush1.msra.mxu0 0.0
    %356 = vmatprep.subr.mxu0 0.0
    %357 = vmatpush1.msra.mxu0 0.0
    %358 = vmatprep.subr.mxu0 0.0
    %359 = vmatpush1.msra.mxu0 0.0
    %360 = vmatprep.subr.mxu0 0.0
    %361 = vmatpush1.msra.mxu0 0.0
    %362 = vmatprep.subr.mxu0 0.0
    %363 = vmatpush1.msra.mxu0 0.0
    %364 = vmatprep.subr.mxu0 0.0
    %365 = vmatpush1.msra.mxu0 0.0
    %366 = vmatprep.subr.mxu0 0.0
    %367 = vmatpush1.msra.mxu0 0.0
    %368 = vmatprep.subr.mxu0 0.0
    %369 = vmatpush1.msra.mxu0 0.0
    %370 = vmatprep.subr.mxu0 0.0
    %371 = vmatpush1.msra.mxu0 0.0
    %372 = vmatprep.subr.mxu0 0.0
    %373 = vmatpush1.msra.mxu0 0.0
    %374 = vmatprep.subr.mxu0 0.0
    %375 = vmatpush1.msra.mxu0 0.0
    %376 = vmatprep.subr.mxu0 0.0
    %377 = vmatpush1.msra.mxu0 0.0
    %378 = vmatprep.subr.mxu0 0.0
    %379 = vmatpush1.msra.mxu0 0.0
    %380 = vmatprep.subr.mxu0 0.0
    %381 = vmatpush1.msra.mxu0 0.0
    %382 = vmatprep.subr.mxu0 0.0
    %383 = vmatpush1.msra.mxu0 0.0
    %384 = vmatprep.subr.mxu0 0.0
    %385 = vmatpush1.msra.mxu0 0.0
    %386 = vmatprep.subr.mxu0 0.0
    %387 = vmatpush1.msra.mxu0 0.0
    %388 = vmatprep.subr.mxu0 0.0
    %389 = vmatpush1.msra.mxu0 0.0
    %390 = vmatprep.subr.mxu0 0.0
    %391 = vmatpush1.msra.mxu0 0.0
    %392 = vmatprep.subr.mxu0 0.0
    %393 = vmatpush1.msra.mxu0 0.0
    %394 = vmatprep.subr.mxu0 0.0
    %395 = vmatpush1.msra.mxu0 0.0
    %396 = vmatprep.subr.mxu0 0.0
    %397 = vmatpush1.msra.mxu0 0.0
    %398 = vmatprep.subr.mxu0 0.0
    %399 = vmatpush1.msra.mxu0 0.0
    %400 = vmatprep.mubr.f32.mxu0 0.0
    %401 = vmatmul.mubr.f32.gmra.mrb[0].mxu0 %v334
    %v402 = vpop.f32.mrb[0].mxu0
    %v403 = vadd.f32 0.0, %v402
    %v404 = vpop.f32.mrb[0].mxu0
    %v405 = vadd.f32 0.0, %v404
    %406 = vdwg.mxu0
    %v409 = vrot.slane %v403, 6
    %v410 = vrot.slane %v405, 6
    %v413 = vadd.f32 %v332, %v409
    %v414 = vadd.f32 %v333, %v410
    %v415 = vxor.u32 %v413, 2147483648
    %v416 = vmul.f32 %v415, 1.442695
    %v417 = vpow.pop %v416
    %v418 = vadd.f32 %v417, 1.0
    %v419 = vrcp.pop %v418
    %v420 = vmul.f32 1.0, %v419
    %v421 = vtanh.pop %v414
    %v422 = vxor.u32 %v414, 2147483648
    %v423 = vmul.f32 %v422, 1.442695
    %v424 = vpow.pop %v423
    %v425 = vadd.f32 %v424, 1.0
    %v426 = vrcp.pop %v425
    %v427 = vmul.f32 1.0, %v426
    %v429 = vrot.slane %v319, 6
    %v431 = vmul.f32 %v420, %v429
    %v432 = vmul.f32 %v420, %v421
    %434 = vrot.lane.b32.xlu0 %v432, 64
    %v435 = vpop.permute.xlu0 %434
    %v437 = vadd.f32 %v431, %v435
    %v438 = vtanh.pop %v437
    %v439 = vmul.f32 %v427, %v438
    %441 = vrot.lane.b32.xlu0 %v439, 64
    %v442 = vpop.permute.xlu0 %441
    %vm444 = vcmask 257026
    %445 = vst.msk [vmem:[#allocation3] sm:$0xc] %vm444, %v442
    %446 = vrot.lane.b32.xlu0 %v439, 32
    %v447 = vpop.permute.xlu0 %446
    %449 = vst.msk [vmem:[#allocation4 + $0xa] sm:$0xc] %vm444, %v447
    %v450 = vld [vmem:[#allocation2] sm:$0x30]
    %v451 = vld [vmem:[#allocation2 + $0x8] sm:$0x30]
    %v452 = vrot.slane %v439, 2
    %453 = vrot.lane.b32.xlu0 %v452, 64
    %v454 = vpop.permute.xlu0 %453
    %v455 = vsel %vm223, %v454, 0
    %457 = vmatprep.subr.mxu0 %v206
    %458 = vmatpush1.msra.mxu0 %v205
    %459 = vmatprep.subr.mxu0 %v208
    %460 = vmatpush1.msra.mxu0 %v207
    %461 = vmatprep.subr.mxu0 %v210
    %462 = vmatpush1.msra.mxu0 %v209
    %463 = vmatprep.subr.mxu0 %v212
    %464 = vmatpush1.msra.mxu0 %v211
    %465 = vmatprep.subr.mxu0 %v214
    %466 = vmatpush1.msra.mxu0 %v213
    %467 = vmatprep.subr.mxu0 %v216
    %468 = vmatpush1.msra.mxu0 %v215
    %469 = vmatprep.subr.mxu0 %v218
    %470 = vmatpush1.msra.mxu0 %v217
    %471 = vmatprep.subr.mxu0 %v220
    %472 = vmatpush1.msra.mxu0 %v219
    %473 = vmatprep.subr.mxu0 0.0
    %474 = vmatpush1.msra.mxu0 0.0
    %475 = vmatprep.subr.mxu0 0.0
    %476 = vmatpush1.msra.mxu0 0.0
    %477 = vmatprep.subr.mxu0 0.0
    %478 = vmatpush1.msra.mxu0 0.0
    %479 = vmatprep.subr.mxu0 0.0
    %480 = vmatpush1.msra.mxu0 0.0
    %481 = vmatprep.subr.mxu0 0.0
    %482 = vmatpush1.msra.mxu0 0.0
    %483 = vmatprep.subr.mxu0 0.0
    %484 = vmatpush1.msra.mxu0 0.0
    %485 = vmatprep.subr.mxu0 0.0
    %486 = vmatpush1.msra.mxu0 0.0
    %487 = vmatprep.subr.mxu0 0.0
    %488 = vmatpush1.msra.mxu0 0.0
    %489 = vmatprep.subr.mxu0 0.0
    %490 = vmatpush1.msra.mxu0 0.0
    %491 = vmatprep.subr.mxu0 0.0
    %492 = vmatpush1.msra.mxu0 0.0
    %493 = vmatprep.subr.mxu0 0.0
    %494 = vmatpush1.msra.mxu0 0.0
    %495 = vmatprep.subr.mxu0 0.0
    %496 = vmatpush1.msra.mxu0 0.0
    %497 = vmatprep.subr.mxu0 0.0
    %498 = vmatpush1.msra.mxu0 0.0
    %499 = vmatprep.subr.mxu0 0.0
    %500 = vmatpush1.msra.mxu0 0.0
    %501 = vmatprep.subr.mxu0 0.0
    %502 = vmatpush1.msra.mxu0 0.0
    %503 = vmatprep.subr.mxu0 0.0
    %504 = vmatpush1.msra.mxu0 0.0
    %505 = vmatprep.subr.mxu0 0.0
    %506 = vmatpush1.msra.mxu0 0.0
    %507 = vmatprep.subr.mxu0 0.0
    %508 = vmatpush1.msra.mxu0 0.0
    %509 = vmatprep.subr.mxu0 0.0
    %510 = vmatpush1.msra.mxu0 0.0
    %511 = vmatprep.subr.mxu0 0.0
    %512 = vmatpush1.msra.mxu0 0.0
    %513 = vmatprep.subr.mxu0 0.0
    %514 = vmatpush1.msra.mxu0 0.0
    %515 = vmatprep.subr.mxu0 0.0
    %516 = vmatpush1.msra.mxu0 0.0
    %517 = vmatprep.subr.mxu0 0.0
    %518 = vmatpush1.msra.mxu0 0.0
    %519 = vmatprep.subr.mxu0 0.0
    %520 = vmatpush1.msra.mxu0 0.0
    %521 = vmatprep.mubr.f32.mxu0 0.0
    %522 = vmatmul.mubr.f32.gmra.mrb[0].mxu0 %v455
    %v523 = vpop.f32.mrb[0].mxu0
    %v524 = vadd.f32 0.0, %v523
    %v525 = vpop.f32.mrb[0].mxu0
    %v526 = vadd.f32 0.0, %v525
    %527 = vdwg.mxu0
    %v530 = vrot.slane %v524, 4
    %v531 = vrot.slane %v526, 4
    %v534 = vadd.f32 %v450, %v530
    %v535 = vadd.f32 %v451, %v531
    %v536 = vxor.u32 %v534, 2147483648
    %v537 = vmul.f32 %v536, 1.442695
    %v538 = vpow.pop %v537
    %v539 = vadd.f32 %v538, 1.0
    %v540 = vrcp.pop %v539
    %v541 = vmul.f32 1.0, %v540
    %v542 = vtanh.pop %v535
    %v543 = vxor.u32 %v535, 2147483648
    %v544 = vmul.f32 %v543, 1.442695
    %v545 = vpow.pop %v544
    %v546 = vadd.f32 %v545, 1.0
    %v547 = vrcp.pop %v546
    %v548 = vmul.f32 1.0, %v547
    %v550 = vrot.slane %v437, 6
    %v552 = vmul.f32 %v541, %v550
    %v553 = vmul.f32 %v541, %v542
    %555 = vrot.lane.b32.xlu0 %v553, 64
    %v556 = vpop.permute.xlu0 %555
    %v558 = vadd.f32 %v552, %v556
    %v559 = vtanh.pop %v558
    %v560 = vmul.f32 %v548, %v559
    %562 = vrot.lane.b32.xlu0 %v560, 64
    %v563 = vpop.permute.xlu0 %562
    %vm565 = vcmask 259076
    %566 = vst.msk [vmem:[#allocation3] sm:$0x30] %vm565, %v563
    %567 = vrot.lane.b32.xlu0 %v560, 32
    %v568 = vpop.permute.xlu0 %567
    %570 = vst.msk [vmem:[#allocation4 + $0x6] sm:$0x30] %vm565, %v568
    %v571 = vld [vmem:[#allocation2] sm:$0xc0]
    %v572 = vld [vmem:[#allocation2 + $0x8] sm:$0xc0]
    %v573 = vrot.slane %v560, 4
    %574 = vrot.lane.b32.xlu0 %v573, 64
    %v575 = vpop.permute.xlu0 %574
    %v576 = vsel %vm223, %v575, 0
    %578 = vmatprep.subr.mxu0 %v206
    %579 = vmatpush1.msra.mxu0 %v205
    %580 = vmatprep.subr.mxu0 %v208
    %581 = vmatpush1.msra.mxu0 %v207
    %582 = vmatprep.subr.mxu0 %v210
    %583 = vmatpush1.msra.mxu0 %v209
    %584 = vmatprep.subr.mxu0 %v212
    %585 = vmatpush1.msra.mxu0 %v211
    %586 = vmatprep.subr.mxu0 %v214
    %587 = vmatpush1.msra.mxu0 %v213
    %588 = vmatprep.subr.mxu0 %v216
    %589 = vmatpush1.msra.mxu0 %v215
    %590 = vmatprep.subr.mxu0 %v218
    %591 = vmatpush1.msra.mxu0 %v217
    %592 = vmatprep.subr.mxu0 %v220
    %593 = vmatpush1.msra.mxu0 %v219
    %594 = vmatprep.subr.mxu0 0.0
    %595 = vmatpush1.msra.mxu0 0.0
    %596 = vmatprep.subr.mxu0 0.0
    %597 = vmatpush1.msra.mxu0 0.0
    %598 = vmatprep.subr.mxu0 0.0
    %599 = vmatpush1.msra.mxu0 0.0
    %600 = vmatprep.subr.mxu0 0.0
    %601 = vmatpush1.msra.mxu0 0.0
    %602 = vmatprep.subr.mxu0 0.0
    %603 = vmatpush1.msra.mxu0 0.0
    %604 = vmatprep.subr.mxu0 0.0
    %605 = vmatpush1.msra.mxu0 0.0
    %606 = vmatprep.subr.mxu0 0.0
    %607 = vmatpush1.msra.mxu0 0.0
    %608 = vmatprep.subr.mxu0 0.0
    %609 = vmatpush1.msra.mxu0 0.0
    %610 = vmatprep.subr.mxu0 0.0
    %611 = vmatpush1.msra.mxu0 0.0
    %612 = vmatprep.subr.mxu0 0.0
    %613 = vmatpush1.msra.mxu0 0.0
    %614 = vmatprep.subr.mxu0 0.0
    %615 = vmatpush1.msra.mxu0 0.0
    %616 = vmatprep.subr.mxu0 0.0
    %617 = vmatpush1.msra.mxu0 0.0
    %618 = vmatprep.subr.mxu0 0.0
    %619 = vmatpush1.msra.mxu0 0.0
    %620 = vmatprep.subr.mxu0 0.0
    %621 = vmatpush1.msra.mxu0 0.0
    %622 = vmatprep.subr.mxu0 0.0
    %623 = vmatpush1.msra.mxu0 0.0
    %624 = vmatprep.subr.mxu0 0.0
    %625 = vmatpush1.msra.mxu0 0.0
    %626 = vmatprep.subr.mxu0 0.0
    %627 = vmatpush1.msra.mxu0 0.0
    %628 = vmatprep.subr.mxu0 0.0
    %629 = vmatpush1.msra.mxu0 0.0
    %630 = vmatprep.subr.mxu0 0.0
    %631 = vmatpush1.msra.mxu0 0.0
    %632 = vmatprep.subr.mxu0 0.0
    %633 = vmatpush1.msra.mxu0 0.0
    %634 = vmatprep.subr.mxu0 0.0
    %635 = vmatpush1.msra.mxu0 0.0
    %636 = vmatprep.subr.mxu0 0.0
    %637 = vmatpush1.msra.mxu0 0.0
    %638 = vmatprep.subr.mxu0 0.0
    %639 = vmatpush1.msra.mxu0 0.0
    %640 = vmatprep.subr.mxu0 0.0
    %641 = vmatpush1.msra.mxu0 0.0
    %642 = vmatprep.mubr.f32.mxu0 0.0
    %643 = vmatmul.mubr.f32.gmra.mrb[0].mxu0 %v576
    %v644 = vpop.f32.mrb[0].mxu0
    %v645 = vadd.f32 0.0, %v644
    %v646 = vpop.f32.mrb[0].mxu0
    %v647 = vadd.f32 0.0, %v646
    %648 = vdwg.mxu0
    %v651 = vrot.slane %v645, 2
    %v652 = vrot.slane %v647, 2
    %v655 = vadd.f32 %v571, %v651
    %v656 = vadd.f32 %v572, %v652
    %v657 = vxor.u32 %v655, 2147483648
    %v658 = vmul.f32 %v657, 1.442695
    %v659 = vpow.pop %v658
    %v660 = vadd.f32 %v659, 1.0
    %v661 = vrcp.pop %v660
    %v662 = vmul.f32 1.0, %v661
    %v663 = vtanh.pop %v656
    %v664 = vxor.u32 %v656, 2147483648
    %v665 = vmul.f32 %v664, 1.442695
    %v666 = vpow.pop %v665
    %v667 = vadd.f32 %v666, 1.0
    %v668 = vrcp.pop %v667
    %v669 = vmul.f32 1.0, %v668
    %v671 = vrot.slane %v558, 6
    %v673 = vmul.f32 %v662, %v671
    %v674 = vmul.f32 %v662, %v663
    %676 = vrot.lane.b32.xlu0 %v674, 64
    %v677 = vpop.permute.xlu0 %676
    %v679 = vadd.f32 %v673, %v677
    %v680 = vtanh.pop %v679
    %v681 = vmul.f32 %v669, %v680
    %683 = vrot.lane.b32.xlu0 %v681, 64
    %v684 = vpop.permute.xlu0 %683
    %vm686 = vcmask 261126
    %687 = vst.msk [vmem:[#allocation3] sm:$0xc0] %vm686, %v684
    %688 = vrot.lane.b32.xlu0 %v681, 32
    %v689 = vpop.permute.xlu0 %688
    %691 = vst.msk [vmem:[#allocation4 + $0x2] sm:$0xc0] %vm686, %v689
    %v692 = vld [vmem:[#allocation2 + $0x10] sm:$0x3]
    %v693 = vld [vmem:[#allocation2 + $0x18] sm:$0x3]
    %v694 = vrot.slane %v681, 6
    %695 = vrot.lane.b32.xlu0 %v694, 64
    %v696 = vpop.permute.xlu0 %695
    %v697 = vsel %vm223, %v696, 0
    %699 = vmatprep.subr.mxu0 %v206
    %700 = vmatpush1.msra.mxu0 %v205
    %701 = vmatprep.subr.mxu0 %v208
    %702 = vmatpush1.msra.mxu0 %v207
    %703 = vmatprep.subr.mxu0 %v210
    %704 = vmatpush1.msra.mxu0 %v209
    %705 = vmatprep.subr.mxu0 %v212
    %706 = vmatpush1.msra.mxu0 %v211
    %707 = vmatprep.subr.mxu0 %v214
    %708 = vmatpush1.msra.mxu0 %v213
    %709 = vmatprep.subr.mxu0 %v216
    %710 = vmatpush1.msra.mxu0 %v215
    %711 = vmatprep.subr.mxu0 %v218
    %712 = vmatpush1.msra.mxu0 %v217
    %713 = vmatprep.subr.mxu0 %v220
    %714 = vmatpush1.msra.mxu0 %v219
    %715 = vmatprep.subr.mxu0 0.0
    %716 = vmatpush1.msra.mxu0 0.0
    %717 = vmatprep.subr.mxu0 0.0
    %718 = vmatpush1.msra.mxu0 0.0
    %719 = vmatprep.subr.mxu0 0.0
    %720 = vmatpush1.msra.mxu0 0.0
    %721 = vmatprep.subr.mxu0 0.0
    %722 = vmatpush1.msra.mxu0 0.0
    %723 = vmatprep.subr.mxu0 0.0
    %724 = vmatpush1.msra.mxu0 0.0
    %725 = vmatprep.subr.mxu0 0.0
    %726 = vmatpush1.msra.mxu0 0.0
    %727 = vmatprep.subr.mxu0 0.0
    %728 = vmatpush1.msra.mxu0 0.0
    %729 = vmatprep.subr.mxu0 0.0
    %730 = vmatpush1.msra.mxu0 0.0
    %731 = vmatprep.subr.mxu0 0.0
    %732 = vmatpush1.msra.mxu0 0.0
    %733 = vmatprep.subr.mxu0 0.0
    %734 = vmatpush1.msra.mxu0 0.0
    %735 = vmatprep.subr.mxu0 0.0
    %736 = vmatpush1.msra.mxu0 0.0
    %737 = vmatprep.subr.mxu0 0.0
    %738 = vmatpush1.msra.mxu0 0.0
    %739 = vmatprep.subr.mxu0 0.0
    %740 = vmatpush1.msra.mxu0 0.0
    %741 = vmatprep.subr.mxu0 0.0
    %742 = vmatpush1.msra.mxu0 0.0
    %743 = vmatprep.subr.mxu0 0.0
    %744 = vmatpush1.msra.mxu0 0.0
    %745 = vmatprep.subr.mxu0 0.0
    %746 = vmatpush1.msra.mxu0 0.0
    %747 = vmatprep.subr.mxu0 0.0
    %748 = vmatpush1.msra.mxu0 0.0
    %749 = vmatprep.subr.mxu0 0.0
    %750 = vmatpush1.msra.mxu0 0.0
    %751 = vmatprep.subr.mxu0 0.0
    %752 = vmatpush1.msra.mxu0 0.0
    %753 = vmatprep.subr.mxu0 0.0
    %754 = vmatpush1.msra.mxu0 0.0
    %755 = vmatprep.subr.mxu0 0.0
    %756 = vmatpush1.msra.mxu0 0.0
    %757 = vmatprep.subr.mxu0 0.0
    %758 = vmatpush1.msra.mxu0 0.0
    %759 = vmatprep.subr.mxu0 0.0
    %760 = vmatpush1.msra.mxu0 0.0
    %761 = vmatprep.subr.mxu0 0.0
    %762 = vmatpush1.msra.mxu0 0.0
    %763 = vmatprep.mubr.f32.mxu0 0.0
    %764 = vmatmul.mubr.f32.gmra.mrb[0].mxu0 %v697
    %v765 = vpop.f32.mrb[0].mxu0
    %v766 = vadd.f32 0.0, %v765
    %v767 = vpop.f32.mrb[0].mxu0
    %v768 = vadd.f32 0.0, %v767
    %769 = vdwg.mxu0
    %v770 = vadd.f32 %v692, %v766
    %v771 = vadd.f32 %v693, %v768
    %v772 = vxor.u32 %v770, 2147483648
    %v773 = vmul.f32 %v772, 1.442695
    %v774 = vpow.pop %v773
    %v775 = vadd.f32 %v774, 1.0
    %v776 = vrcp.pop %v775
    %v777 = vmul.f32 1.0, %v776
    %v778 = vtanh.pop %v771
    %v779 = vxor.u32 %v771, 2147483648
    %v780 = vmul.f32 %v779, 1.442695
    %v781 = vpow.pop %v780
    %v782 = vadd.f32 %v781, 1.0
    %v783 = vrcp.pop %v782
    %v784 = vmul.f32 1.0, %v783
    %v786 = vrot.slane %v679, 6
    %v788 = vmul.f32 %v777, %v786
    %v789 = vmul.f32 %v777, %v778
    %791 = vrot.lane.b32.xlu0 %v789, 64
    %v792 = vpop.permute.xlu0 %791
    %v794 = vadd.f32 %v788, %v792
    %v795 = vtanh.pop %v794
    %v796 = vmul.f32 %v784, %v795
    %798 = vrot.lane.b32.xlu0 %v796, 64
    %v799 = vpop.permute.xlu0 %798
    %801 = vst.msk [vmem:[#allocation3 + $0x8] sm:$0x3] %vm326, %v799
    %802 = vrot.lane.b32.xlu0 %v796, 32
    %v803 = vpop.permute.xlu0 %802
    %805 = vst.msk [vmem:[#allocation4 + $0x6] sm:$0x3] %vm326, %v803
    %v806 = vld [vmem:[#allocation2 + $0x10] sm:$0xc]
    %v807 = vld [vmem:[#allocation2 + $0x18] sm:$0xc]
    %v808 = vsel %vm223, %v799, 0
    %810 = vmatprep.subr.mxu0 %v206
    %811 = vmatpush1.msra.mxu0 %v205
    %812 = vmatprep.subr.mxu0 %v208
    %813 = vmatpush1.msra.mxu0 %v207
    %814 = vmatprep.subr.mxu0 %v210
    %815 = vmatpush1.msra.mxu0 %v209
    %816 = vmatprep.subr.mxu0 %v212
    %817 = vmatpush1.msra.mxu0 %v211
    %818 = vmatprep.subr.mxu0 %v214
    %819 = vmatpush1.msra.mxu0 %v213
    %820 = vmatprep.subr.mxu0 %v216
    %821 = vmatpush1.msra.mxu0 %v215
    %822 = vmatprep.subr.mxu0 %v218
    %823 = vmatpush1.msra.mxu0 %v217
    %824 = vmatprep.subr.mxu0 %v220
    %825 = vmatpush1.msra.mxu0 %v219
    %826 = vmatprep.subr.mxu0 0.0
    %827 = vmatpush1.msra.mxu0 0.0
    %828 = vmatprep.subr.mxu0 0.0
    %829 = vmatpush1.msra.mxu0 0.0
    %830 = vmatprep.subr.mxu0 0.0
    %831 = vmatpush1.msra.mxu0 0.0
    %832 = vmatprep.subr.mxu0 0.0
    %833 = vmatpush1.msra.mxu0 0.0
    %834 = vmatprep.subr.mxu0 0.0
    %835 = vmatpush1.msra.mxu0 0.0
    %836 = vmatprep.subr.mxu0 0.0
    %837 = vmatpush1.msra.mxu0 0.0
    %838 = vmatprep.subr.mxu0 0.0
    %839 = vmatpush1.msra.mxu0 0.0
    %840 = vmatprep.subr.mxu0 0.0
    %841 = vmatpush1.msra.mxu0 0.0
    %842 = vmatprep.subr.mxu0 0.0
    %843 = vmatpush1.msra.mxu0 0.0
    %844 = vmatprep.subr.mxu0 0.0
    %845 = vmatpush1.msra.mxu0 0.0
    %846 = vmatprep.subr.mxu0 0.0
    %847 = vmatpush1.msra.mxu0 0.0
    %848 = vmatprep.subr.mxu0 0.0
    %849 = vmatpush1.msra.mxu0 0.0
    %850 = vmatprep.subr.mxu0 0.0
    %851 = vmatpush1.msra.mxu0 0.0
    %852 = vmatprep.subr.mxu0 0.0
    %853 = vmatpush1.msra.mxu0 0.0
    %854 = vmatprep.subr.mxu0 0.0
    %855 = vmatpush1.msra.mxu0 0.0
    %856 = vmatprep.subr.mxu0 0.0
    %857 = vmatpush1.msra.mxu0 0.0
    %858 = vmatprep.subr.mxu0 0.0
    %859 = vmatpush1.msra.mxu0 0.0
    %860 = vmatprep.subr.mxu0 0.0
    %861 = vmatpush1.msra.mxu0 0.0
    %862 = vmatprep.subr.mxu0 0.0
    %863 = vmatpush1.msra.mxu0 0.0
    %864 = vmatprep.subr.mxu0 0.0
    %865 = vmatpush1.msra.mxu0 0.0
    %866 = vmatprep.subr.mxu0 0.0
    %867 = vmatpush1.msra.mxu0 0.0
    %868 = vmatprep.subr.mxu0 0.0
    %869 = vmatpush1.msra.mxu0 0.0
    %870 = vmatprep.subr.mxu0 0.0
    %871 = vmatpush1.msra.mxu0 0.0
    %872 = vmatprep.subr.mxu0 0.0
    %873 = vmatpush1.msra.mxu0 0.0
    %874 = vmatprep.mubr.f32.mxu0 0.0
    %875 = vmatmul.mubr.f32.gmra.mrb[0].mxu0 %v808
    %v876 = vpop.f32.mrb[0].mxu0
    %v877 = vadd.f32 0.0, %v876
    %v878 = vpop.f32.mrb[0].mxu0
    %v879 = vadd.f32 0.0, %v878
    %880 = vdwg.mxu0
    %v883 = vrot.slane %v877, 6
    %v884 = vrot.slane %v879, 6
    %v887 = vadd.f32 %v806, %v883
    %v888 = vadd.f32 %v807, %v884
    %v889 = vxor.u32 %v887, 2147483648
    %v890 = vmul.f32 %v889, 1.442695
    %v891 = vpow.pop %v890
    %v892 = vadd.f32 %v891, 1.0
    %v893 = vrcp.pop %v892
    %v894 = vmul.f32 1.0, %v893
    %v895 = vtanh.pop %v888
    %v896 = vxor.u32 %v888, 2147483648
    %v897 = vmul.f32 %v896, 1.442695
    %v898 = vpow.pop %v897
    %v899 = vadd.f32 %v898, 1.0
    %v900 = vrcp.pop %v899
    %v901 = vmul.f32 1.0, %v900
    %v903 = vrot.slane %v794, 6
    %v905 = vmul.f32 %v894, %v903
    %v906 = vmul.f32 %v894, %v895
    %908 = vrot.lane.b32.xlu0 %v906, 64
    %v909 = vpop.permute.xlu0 %908
    %v911 = vadd.f32 %v905, %v909
    %v912 = vtanh.pop %v911
    %v913 = vmul.f32 %v901, %v912
    %915 = vrot.lane.b32.xlu0 %v913, 64
    %v916 = vpop.permute.xlu0 %915
    %918 = vst.msk [vmem:[#allocation3 + $0x8] sm:$0xc] %vm444, %v916
    %919 = vrot.lane.b32.xlu0 %v913, 32
    %v920 = vpop.permute.xlu0 %919
    %922 = vst.msk [vmem:[#allocation4 + $0x2] sm:$0xc] %vm444, %v920
    %v923 = vld [vmem:[#allocation2 + $0x10] sm:$0x30]
    %v924 = vld [vmem:[#allocation2 + $0x18] sm:$0x30]
    %v925 = vrot.slane %v913, 2
    %926 = vrot.lane.b32.xlu0 %v925, 64
    %v927 = vpop.permute.xlu0 %926
    %v928 = vsel %vm223, %v927, 0
    %930 = vmatprep.subr.mxu0 %v206
    %931 = vmatpush1.msra.mxu0 %v205
    %932 = vmatprep.subr.mxu0 %v208
    %933 = vmatpush1.msra.mxu0 %v207
    %934 = vmatprep.subr.mxu0 %v210
    %935 = vmatpush1.msra.mxu0 %v209
    %936 = vmatprep.subr.mxu0 %v212
    %937 = vmatpush1.msra.mxu0 %v211
    %938 = vmatprep.subr.mxu0 %v214
    %939 = vmatpush1.msra.mxu0 %v213
    %940 = vmatprep.subr.mxu0 %v216
    %941 = vmatpush1.msra.mxu0 %v215
    %942 = vmatprep.subr.mxu0 %v218
    %943 = vmatpush1.msra.mxu0 %v217
    %944 = vmatprep.subr.mxu0 %v220
    %945 = vmatpush1.msra.mxu0 %v219
    %946 = vmatprep.subr.mxu0 0.0
    %947 = vmatpush1.msra.mxu0 0.0
    %948 = vmatprep.subr.mxu0 0.0
    %949 = vmatpush1.msra.mxu0 0.0
    %950 = vmatprep.subr.mxu0 0.0
    %951 = vmatpush1.msra.mxu0 0.0
    %952 = vmatprep.subr.mxu0 0.0
    %953 = vmatpush1.msra.mxu0 0.0
    %954 = vmatprep.subr.mxu0 0.0
    %955 = vmatpush1.msra.mxu0 0.0
    %956 = vmatprep.subr.mxu0 0.0
    %957 = vmatpush1.msra.mxu0 0.0
    %958 = vmatprep.subr.mxu0 0.0
    %959 = vmatpush1.msra.mxu0 0.0
    %960 = vmatprep.subr.mxu0 0.0
    %961 = vmatpush1.msra.mxu0 0.0
    %962 = vmatprep.subr.mxu0 0.0
    %963 = vmatpush1.msra.mxu0 0.0
    %964 = vmatprep.subr.mxu0 0.0
    %965 = vmatpush1.msra.mxu0 0.0
    %966 = vmatprep.subr.mxu0 0.0
    %967 = vmatpush1.msra.mxu0 0.0
    %968 = vmatprep.subr.mxu0 0.0
    %969 = vmatpush1.msra.mxu0 0.0
    %970 = vmatprep.subr.mxu0 0.0
    %971 = vmatpush1.msra.mxu0 0.0
    %972 = vmatprep.subr.mxu0 0.0
    %973 = vmatpush1.msra.mxu0 0.0
    %974 = vmatprep.subr.mxu0 0.0
    %975 = vmatpush1.msra.mxu0 0.0
    %976 = vmatprep.subr.mxu0 0.0
    %977 = vmatpush1.msra.mxu0 0.0
    %978 = vmatprep.subr.mxu0 0.0
    %979 = vmatpush1.msra.mxu0 0.0
    %980 = vmatprep.subr.mxu0 0.0
    %981 = vmatpush1.msra.mxu0 0.0
    %982 = vmatprep.subr.mxu0 0.0
    %983 = vmatpush1.msra.mxu0 0.0
    %984 = vmatprep.subr.mxu0 0.0
    %985 = vmatpush1.msra.mxu0 0.0
    %986 = vmatprep.subr.mxu0 0.0
    %987 = vmatpush1.msra.mxu0 0.0
    %988 = vmatprep.subr.mxu0 0.0
    %989 = vmatpush1.msra.mxu0 0.0
    %990 = vmatprep.subr.mxu0 0.0
    %991 = vmatpush1.msra.mxu0 0.0
    %992 = vmatprep.subr.mxu0 0.0
    %993 = vmatpush1.msra.mxu0 0.0
    %994 = vmatprep.mubr.f32.mxu0 0.0
    %995 = vmatmul.mubr.f32.gmra.mrb[0].mxu0 %v928
    %v996 = vpop.f32.mrb[0].mxu0
    %v997 = vadd.f32 0.0, %v996
    %v998 = vpop.f32.mrb[0].mxu0
    %v999 = vadd.f32 0.0, %v998
    %1000 = vdwg.mxu0
    %v1003 = vrot.slane %v997, 4
    %v1004 = vrot.slane %v999, 4
    %v1007 = vadd.f32 %v923, %v1003
    %v1008 = vadd.f32 %v924, %v1004
    %v1009 = vxor.u32 %v1007, 2147483648
    %v1010 = vmul.f32 %v1009, 1.442695
    %v1011 = vpow.pop %v1010
    %v1012 = vadd.f32 %v1011, 1.0
    %v1013 = vrcp.pop %v1012
    %v1014 = vmul.f32 1.0, %v1013
    %v1015 = vtanh.pop %v1008
    %v1016 = vxor.u32 %v1008, 2147483648
    %v1017 = vmul.f32 %v1016, 1.442695
    %v1018 = vpow.pop %v1017
    %v1019 = vadd.f32 %v1018, 1.0
    %v1020 = vrcp.pop %v1019
    %v1021 = vmul.f32 1.0, %v1020
    %v1023 = vrot.slane %v911, 6
    %v1025 = vmul.f32 %v1014, %v1023
    %v1026 = vmul.f32 %v1014, %v1015
    %1028 = vrot.lane.b32.xlu0 %v1026, 64
    %v1029 = vpop.permute.xlu0 %1028
    %v1031 = vadd.f32 %v1025, %v1029
    %v1032 = vtanh.pop %v1031
    %v1033 = vmul.f32 %v1021, %v1032
    %1035 = vrot.lane.b32.xlu0 %v1033, 64
    %v1036 = vpop.permute.xlu0 %1035
    %1038 = vst.msk [vmem:[#allocation3 + $0x8] sm:$0x30] %vm565, %v1036
    %1039 = vrot.lane.b32.xlu0 %v1033, 32
    %v1040 = vpop.permute.xlu0 %1039
    %1042 = vst.msk [vmem:[#allocation4 - $0x2] sm:$0x30] %vm565, %v1040
    %v1043 = vld [vmem:[#allocation2 + $0x10] sm:$0xc0]
    %v1044 = vld [vmem:[#allocation2 + $0x18] sm:$0xc0]
    %v1045 = vrot.slane %v1033, 4
    %1046 = vrot.lane.b32.xlu0 %v1045, 64
    %v1047 = vpop.permute.xlu0 %1046
    %v1048 = vsel %vm223, %v1047, 0
    %1050 = vmatprep.subr.mxu0 %v206
    %1051 = vmatpush1.msra.mxu0 %v205
    %1052 = vmatprep.subr.mxu0 %v208
    %1053 = vmatpush1.msra.mxu0 %v207
    %1054 = vmatprep.subr.mxu0 %v210
    %1055 = vmatpush1.msra.mxu0 %v209
    %1056 = vmatprep.subr.mxu0 %v212
    %1057 = vmatpush1.msra.mxu0 %v211
    %1058 = vmatprep.subr.mxu0 %v214
    %1059 = vmatpush1.msra.mxu0 %v213
    %1060 = vmatprep.subr.mxu0 %v216
    %1061 = vmatpush1.msra.mxu0 %v215
    %1062 = vmatprep.subr.mxu0 %v218
    %1063 = vmatpush1.msra.mxu0 %v217
    %1064 = vmatprep.subr.mxu0 %v220
    %1065 = vmatpush1.msra.mxu0 %v219
    %1066 = vmatprep.subr.mxu0 0.0
    %1067 = vmatpush1.msra.mxu0 0.0
    %1068 = vmatprep.subr.mxu0 0.0
    %1069 = vmatpush1.msra.mxu0 0.0
    %1070 = vmatprep.subr.mxu0 0.0
    %1071 = vmatpush1.msra.mxu0 0.0
    %1072 = vmatprep.subr.mxu0 0.0
    %1073 = vmatpush1.msra.mxu0 0.0
    %1074 = vmatprep.subr.mxu0 0.0
    %1075 = vmatpush1.msra.mxu0 0.0
    %1076 = vmatprep.subr.mxu0 0.0
    %1077 = vmatpush1.msra.mxu0 0.0
    %1078 = vmatprep.subr.mxu0 0.0
    %1079 = vmatpush1.msra.mxu0 0.0
    %1080 = vmatprep.subr.mxu0 0.0
    %1081 = vmatpush1.msra.mxu0 0.0
    %1082 = vmatprep.subr.mxu0 0.0
    %1083 = vmatpush1.msra.mxu0 0.0
    %1084 = vmatprep.subr.mxu0 0.0
    %1085 = vmatpush1.msra.mxu0 0.0
    %1086 = vmatprep.subr.mxu0 0.0
    %1087 = vmatpush1.msra.mxu0 0.0
    %1088 = vmatprep.subr.mxu0 0.0
    %1089 = vmatpush1.msra.mxu0 0.0
    %1090 = vmatprep.subr.mxu0 0.0
    %1091 = vmatpush1.msra.mxu0 0.0
    %1092 = vmatprep.subr.mxu0 0.0
    %1093 = vmatpush1.msra.mxu0 0.0
    %1094 = vmatprep.subr.mxu0 0.0
    %1095 = vmatpush1.msra.mxu0 0.0
    %1096 = vmatprep.subr.mxu0 0.0
    %1097 = vmatpush1.msra.mxu0 0.0
    %1098 = vmatprep.subr.mxu0 0.0
    %1099 = vmatpush1.msra.mxu0 0.0
    %1100 = vmatprep.subr.mxu0 0.0
    %1101 = vmatpush1.msra.mxu0 0.0
    %1102 = vmatprep.subr.mxu0 0.0
    %1103 = vmatpush1.msra.mxu0 0.0
    %1104 = vmatprep.subr.mxu0 0.0
    %1105 = vmatpush1.msra.mxu0 0.0
    %1106 = vmatprep.subr.mxu0 0.0
    %1107 = vmatpush1.msra.mxu0 0.0
    %1108 = vmatprep.subr.mxu0 0.0
    %1109 = vmatpush1.msra.mxu0 0.0
    %1110 = vmatprep.subr.mxu0 0.0
    %1111 = vmatpush1.msra.mxu0 0.0
    %1112 = vmatprep.subr.mxu0 0.0
    %1113 = vmatpush1.msra.mxu0 0.0
    %1114 = vmatprep.mubr.f32.mxu0 0.0
    %1115 = vmatmul.mubr.f32.gmra.mrb[0].mxu0 %v1048
    %v1116 = vpop.f32.mrb[0].mxu0
    %v1117 = vadd.f32 0.0, %v1116
    %v1118 = vpop.f32.mrb[0].mxu0
    %v1119 = vadd.f32 0.0, %v1118
    %1120 = vdwg.mxu0
    %v1123 = vrot.slane %v1117, 2
    %v1124 = vrot.slane %v1119, 2
    %v1127 = vadd.f32 %v1043, %v1123
    %v1128 = vadd.f32 %v1044, %v1124
    %v1129 = vxor.u32 %v1127, 2147483648
    %v1130 = vmul.f32 %v1129, 1.442695
    %v1131 = vpow.pop %v1130
    %v1132 = vadd.f32 %v1131, 1.0
    %v1133 = vrcp.pop %v1132
    %v1134 = vmul.f32 1.0, %v1133
    %v1135 = vtanh.pop %v1128
    %v1136 = vxor.u32 %v1128, 2147483648
    %v1137 = vmul.f32 %v1136, 1.442695
    %v1138 = vpow.pop %v1137
    %v1139 = vadd.f32 %v1138, 1.0
    %v1140 = vrcp.pop %v1139
    %v1141 = vmul.f32 1.0, %v1140
    %v1143 = vrot.slane %v1031, 6
    %v1145 = vmul.f32 %v1134, %v1143
    %v1146 = vmul.f32 %v1134, %v1135
    %1148 = vrot.lane.b32.xlu0 %v1146, 64
    %v1149 = vpop.permute.xlu0 %1148
    %v1151 = vadd.f32 %v1145, %v1149
    %v1152 = vtanh.pop %v1151
    %v1153 = vmul.f32 %v1141, %v1152
    %1155 = vrot.lane.b32.xlu0 %v1153, 64
    %v1156 = vpop.permute.xlu0 %1155
    %1158 = vst.msk [vmem:[#allocation3 + $0x8] sm:$0xc0] %vm686, %v1156
    %1159 = vrot.lane.b32.xlu0 %v1153, 32
    %v1160 = vpop.permute.xlu0 %1159
    %1162 = vst.msk [vmem:[#allocation4 - $0x6] sm:$0xc0] %vm686, %v1160
    %v1163 = vld [vmem:[#allocation3] sm:$0xff]
    %v1164 = vld [vmem:[#allocation3 + $0x8] sm:$0xff]
    %v1165 = vld [vmem:[#allocation11] sm:$0xff]
    %v1166 = vld [vmem:[#allocation11 + $0x8] sm:$0xff]
    %v1167 = vld [vmem:[#allocation11 + $0x10] sm:$0xff]
    %v1168 = vld [vmem:[#allocation11 + $0x18] sm:$0xff]
    %v1169 = vld [vmem:[#allocation4] sm:$0xff]
    %v1170 = vld [vmem:[#allocation4 + $0x8] sm:$0xff]
    %v1171 = vld [vmem:[#allocation13] sm:$0xff]
    %v1172 = vld [vmem:[#allocation13 + $0x8] sm:$0xff]
    %v1173 = vld [vmem:[#allocation13 + $0x10] sm:$0xff]
    %v1174 = vld [vmem:[#allocation13 + $0x18] sm:$0xff]
    %v1176 = vsel %vm117, %v1169, 0
    %v1179 = vsel %vm117, %v1170, 0
    %1181 = vmatprep.subr.mxu0 0.0
    %1182 = vmatpush1.msra.mxu0 %v1171
    %1183 = vmatprep.subr.mxu0 0.0
    %1184 = vmatpush1.msra.mxu0 %v1172
    %1185 = vmatprep.subr.mxu0 0.0
    %1186 = vmatpush1.msra.mxu0 %v1173
    %1187 = vmatprep.subr.mxu0 0.0
    %1188 = vmatpush1.msra.mxu0 %v1174
    %1189 = vmatprep.subr.mxu0 0.0
    %1190 = vmatpush1.msra.mxu0 0.0
    %1191 = vmatprep.subr.mxu0 0.0
    %1192 = vmatpush1.msra.mxu0 0.0
    %1193 = vmatprep.subr.mxu0 0.0
    %1194 = vmatpush1.msra.mxu0 0.0
    %1195 = vmatprep.subr.mxu0 0.0
    %1196 = vmatpush1.msra.mxu0 0.0
    %1197 = vmatprep.subr.mxu0 0.0
    %1198 = vmatpush1.msra.mxu0 0.0
    %1199 = vmatprep.subr.mxu0 0.0
    %1200 = vmatpush1.msra.mxu0 0.0
    %1201 = vmatprep.subr.mxu0 0.0
    %1202 = vmatpush1.msra.mxu0 0.0
    %1203 = vmatprep.subr.mxu0 0.0
    %1204 = vmatpush1.msra.mxu0 0.0
    %1205 = vmatprep.subr.mxu0 0.0
    %1206 = vmatpush1.msra.mxu0 0.0
    %1207 = vmatprep.subr.mxu0 0.0
    %1208 = vmatpush1.msra.mxu0 0.0
    %1209 = vmatprep.subr.mxu0 0.0
    %1210 = vmatpush1.msra.mxu0 0.0
    %1211 = vmatprep.subr.mxu0 0.0
    %1212 = vmatpush1.msra.mxu0 0.0
    %1213 = vmatprep.subr.mxu0 0.0
    %1214 = vmatpush1.msra.mxu0 0.0
    %1215 = vmatprep.subr.mxu0 0.0
    %1216 = vmatpush1.msra.mxu0 0.0
    %1217 = vmatprep.subr.mxu0 0.0
    %1218 = vmatpush1.msra.mxu0 0.0
    %1219 = vmatprep.subr.mxu0 0.0
    %1220 = vmatpush1.msra.mxu0 0.0
    %1221 = vmatprep.subr.mxu0 0.0
    %1222 = vmatpush1.msra.mxu0 0.0
    %1223 = vmatprep.subr.mxu0 0.0
    %1224 = vmatpush1.msra.mxu0 0.0
    %1225 = vmatprep.subr.mxu0 0.0
    %1226 = vmatpush1.msra.mxu0 0.0
    %1227 = vmatprep.subr.mxu0 0.0
    %1228 = vmatpush1.msra.mxu0 0.0
    %1229 = vmatprep.subr.mxu0 0.0
    %1230 = vmatpush1.msra.mxu0 0.0
    %1231 = vmatprep.subr.mxu0 0.0
    %1232 = vmatpush1.msra.mxu0 0.0
    %1233 = vmatprep.subr.mxu0 0.0
    %1234 = vmatpush1.msra.mxu0 0.0
    %1235 = vmatprep.subr.mxu0 0.0
    %1236 = vmatpush1.msra.mxu0 0.0
    %1237 = vmatprep.subr.mxu0 0.0
    %1238 = vmatpush1.msra.mxu0 0.0
    %1239 = vmatprep.subr.mxu0 0.0
    %1240 = vmatpush1.msra.mxu0 0.0
    %1241 = vmatprep.subr.mxu0 0.0
    %1242 = vmatpush1.msra.mxu0 0.0
    %1243 = vmatprep.subr.mxu0 0.0
    %1244 = vmatpush1.msra.mxu0 0.0
    %1245 = vmatprep.mubr.f32.mxu0 0.0
    %1246 = vmatmul.mubr.f32.gmra.mrb[0].mxu0 %v1176
    %v1247 = vpop.f32.mrb[0].mxu0
    %v1248 = vadd.f32 0.0, %v1247
    %v1249 = vpop.f32.mrb[0].mxu0
    %1250 = vmatprep.mubr.f32.mxu0 0.0
    %1251 = vmatmul.mubr.f32.gmra.mrb[0].mxu0 %v1179
    %v1252 = vpop.f32.mrb[0].mxu0
    %v1253 = vadd.f32 0.0, %v1252
    %v1254 = vpop.f32.mrb[0].mxu0
    %1255 = vdwg.mxu0
    %v1257 = vsel %vm117, %v1163, 0
    %v1260 = vsel %vm117, %v1164, 0
    %1262 = vmatprep.subr.mxu0 0.0
    %1263 = vmatpush1.msra.mxu0 %v1165
    %1264 = vmatprep.subr.mxu0 0.0
    %1265 = vmatpush1.msra.mxu0 %v1166
    %1266 = vmatprep.subr.mxu0 0.0
    %1267 = vmatpush1.msra.mxu0 %v1167
    %1268 = vmatprep.subr.mxu0 0.0
    %1269 = vmatpush1.msra.mxu0 %v1168
    %1270 = vmatprep.subr.mxu0 0.0
    %1271 = vmatpush1.msra.mxu0 0.0
    %1272 = vmatprep.subr.mxu0 0.0
    %1273 = vmatpush1.msra.mxu0 0.0
    %1274 = vmatprep.subr.mxu0 0.0
    %1275 = vmatpush1.msra.mxu0 0.0
    %1276 = vmatprep.subr.mxu0 0.0
    %1277 = vmatpush1.msra.mxu0 0.0
    %1278 = vmatprep.subr.mxu0 0.0
    %1279 = vmatpush1.msra.mxu0 0.0
    %1280 = vmatprep.subr.mxu0 0.0
    %1281 = vmatpush1.msra.mxu0 0.0
    %1282 = vmatprep.subr.mxu0 0.0
    %1283 = vmatpush1.msra.mxu0 0.0
    %1284 = vmatprep.subr.mxu0 0.0
    %1285 = vmatpush1.msra.mxu0 0.0
    %1286 = vmatprep.subr.mxu0 0.0
    %1287 = vmatpush1.msra.mxu0 0.0
    %1288 = vmatprep.subr.mxu0 0.0
    %1289 = vmatpush1.msra.mxu0 0.0
    %1290 = vmatprep.subr.mxu0 0.0
    %1291 = vmatpush1.msra.mxu0 0.0
    %1292 = vmatprep.subr.mxu0 0.0
    %1293 = vmatpush1.msra.mxu0 0.0
    %1294 = vmatprep.subr.mxu0 0.0
    %1295 = vmatpush1.msra.mxu0 0.0
    %1296 = vmatprep.subr.mxu0 0.0
    %1297 = vmatpush1.msra.mxu0 0.0
    %1298 = vmatprep.subr.mxu0 0.0
    %1299 = vmatpush1.msra.mxu0 0.0
    %1300 = vmatprep.subr.mxu0 0.0
    %1301 = vmatpush1.msra.mxu0 0.0
    %1302 = vmatprep.subr.mxu0 0.0
    %1303 = vmatpush1.msra.mxu0 0.0
    %1304 = vmatprep.subr.mxu0 0.0
    %1305 = vmatpush1.msra.mxu0 0.0
    %1306 = vmatprep.subr.mxu0 0.0
    %1307 = vmatpush1.msra.mxu0 0.0
    %1308 = vmatprep.subr.mxu0 0.0
    %1309 = vmatpush1.msra.mxu0 0.0
    %1310 = vmatprep.subr.mxu0 0.0
    %1311 = vmatpush1.msra.mxu0 0.0
    %1312 = vmatprep.subr.mxu0 0.0
    %1313 = vmatpush1.msra.mxu0 0.0
    %1314 = vmatprep.subr.mxu0 0.0
    %1315 = vmatpush1.msra.mxu0 0.0
    %1316 = vmatprep.subr.mxu0 0.0
    %1317 = vmatpush1.msra.mxu0 0.0
    %1318 = vmatprep.subr.mxu0 0.0
    %1319 = vmatpush1.msra.mxu0 0.0
    %1320 = vmatprep.subr.mxu0 0.0
    %1321 = vmatpush1.msra.mxu0 0.0
    %1322 = vmatprep.subr.mxu0 0.0
    %1323 = vmatpush1.msra.mxu0 0.0
    %1324 = vmatprep.subr.mxu0 0.0
    %1325 = vmatpush1.msra.mxu0 0.0
    %1326 = vmatprep.mubr.f32.mxu0 0.0
    %1327 = vmatmul.mubr.f32.gmra.mrb[0].mxu0 %v1257
    %v1328 = vpop.f32.mrb[0].mxu0
    %v1329 = vadd.f32 %v1248, %v1328
    %v1330 = vpop.f32.mrb[0].mxu0
    %1331 = vmatprep.mubr.f32.mxu0 0.0
    %1332 = vmatmul.mubr.f32.gmra.mrb[0].mxu0 %v1260
    %v1333 = vpop.f32.mrb[0].mxu0
    %v1334 = vadd.f32 %v1253, %v1333
    %v1335 = vpop.f32.mrb[0].mxu0
    %1336 = vdwg.mxu0
    %v1337 = vld [vmem:[%s6] sm:$0x1]
    %v1339 = vlaneseq
    %v1340 = vshrl.u32 %v1339, 7
    %v1341 = vsub.s32 0, %v1340
    %v1342 = vrot.slane %v1337, %v1341
    %v1344 = vadd.f32 %v1329, %v1342
    %v1345 = vadd.f32 %v1334, %v1342
    %1346 = vst [vmem:[#allocation14] sm:$0xff] %v1344
    %1347 = vst [vmem:[#allocation14 + $0x8] sm:$0xff] %v1345
    // Predicated region
    $region50: #{tpu_custom_call.1} parent=1 // pred_check
      _
    $region51: #{tpu_custom_call.1} parent=1 // pred_check_branch
      %1349 = sbr.rel (0) target = $region53
    $region52: #{tpu_custom_call.1} parent=1 // pred_region
      %s1351 = ssub.s32 256, 256
      %1352 = vsyncadd [#allocation7], %s1351
      %s1353 = sshll.u32 [#allocation14], 4
      %s1354 = int_to_ptr.vmem [resolvable:$true] %s1353
      %1359 = dma.vmem_to_hbm [thread:$0]  %s1354, 256, %s7, [#allocation7], 128, 128, 8
    $region53: #{tpu_custom_call.1} parent=1 // pred_fallthru
      _
    // Predicated region
    $region54: #{tpu_custom_call.1} parent=1 // pred_check
      _
    $region55: #{tpu_custom_call.1} parent=1 // pred_check_branch
      %1361 = sbr.rel (0) target = $region57
    $region56: #{tpu_custom_call.1} parent=1 // pred_region
      %1362 = dma.done [#allocation7], 256
    $region57: #{tpu_custom_call.1} parent=1 // pred_fallthru
      _
    %1363 = vsyncpa [#allocation6], 1
    %1364 = vsyncpa [#allocation9], 1
    %1365 = vsyncpa [#allocation12], 1
    %1366 = vsyncpa [#allocation7], 1

</llo_original>
